<compile_context>
chip_gen: v7x
topology: tpu7x:2x2x1
jax: 0.10.0
libtpu: 0.0.40
codegen_flags: <defaults>
</compile_context>

<pallas_src>
import jax
import jax.numpy as jnp
from jax import lax
from jax.experimental import pallas as pl
from jax.experimental.pallas import tpu as pltpu


def _round_up(n, m):
    return ((n + m - 1) // m) * m


def gaussian_mlp_kernel(x_ref, we_ref, be_ref, wh_ref, bh_ref,
                        whd_ref, bhd_ref, out_ref):
    # embedding layer: (tb, E) @ (E, H) -> f32 accumulate
    h = jnp.dot(x_ref[...], we_ref[...], preferred_element_type=jnp.float32)
    h = h + be_ref[...]                               # (tb, H) + (1, H), f32

    # hidden MLP stack (num_layer is static -> unrolled)
    num_layer = wh_ref.shape[0]
    for i in range(num_layer):
        h = jnp.dot(h.astype(jnp.bfloat16), wh_ref[i],
                    preferred_element_type=jnp.float32)
        h = jnp.maximum(h + bh_ref[i], 0.0)           # bias + ReLU in f32

    # fused heads: (tb, H) @ (H, 2) -> (tb, 2); col 0 = mu, col 1 = sigma logit
    z = jnp.dot(h.astype(jnp.bfloat16), whd_ref[...],
                preferred_element_type=jnp.float32) + bhd_ref[...]

    # single-branch numerically-stable softplus: max(x,0) + log1p(exp(-|x|))
    sp = jnp.maximum(z, 0.0) + jnp.log1p(jnp.exp(-jnp.abs(z)))
    col = lax.broadcasted_iota(jnp.int32, z.shape, 1)
    out_ref[...] = jnp.where(col == 0, z, sp + 1e-6).astype(out_ref.dtype)


def gaussian_mlp_forward(x, params, *, batch_tile=None):
    """x: (B, E) float32. Returns (mu, sigma), each (B, 1) float32."""
    we, be, wh, bh, wmu, bmu, wsig, bsig = params
    B, E = x.shape
    H = we.shape[1]
    L = wh.shape[0]

    # Pad feature dims to full 128-lane vregs / MXU column groups (exact: zeros).
    E_pad = _round_up(max(E, 1), 128)
    H_pad = _round_up(max(H, 1), 128)

    # Batch tile: multiple of 8 sublanes, capped so the grid has many steps.
    tb = batch_tile if batch_tile is not None else min(_round_up(B, 8), 256)
    tb = max(8, _round_up(tb, 8))
    B_pad = _round_up(B, tb)
    grid = (B_pad // tb,)

    f32, bf16 = jnp.float32, jnp.bfloat16

    def pad2(a, r, c):
        return jnp.pad(a, ((0, r - a.shape[0]), (0, c - a.shape[1])))

    # bf16 for all MXU operands; biases stay f32.
    x_p = jnp.pad(x, ((0, B_pad - B), (0, E_pad - E))).astype(bf16)
    we_p = pad2(we, E_pad, H_pad).astype(bf16)
    be_p = pad2(be, 1, H_pad).astype(f32)
    wh_p = jnp.pad(wh, ((0, 0), (0, H_pad - H), (0, H_pad - H))).astype(bf16)
    bh_p = jnp.pad(bh, ((0, 0), (0, 0), (0, H_pad - H))).astype(f32)
    # Fuse the mu / sigma heads into one (H_pad, 2) weight and (1, 2) bias.
    whd = pad2(jnp.concatenate([wmu, wsig], axis=1), H_pad, 2).astype(bf16)
    bhd = jnp.concatenate([bmu, bsig], axis=1).astype(f32)

    full = lambda shape: pl.BlockSpec(shape, lambda i: tuple(0 for _ in shape))

    # Advisory cost estimate for the XLA scheduler.
    flops = 2 * B_pad * (E_pad * H_pad + L * H_pad * H_pad + 2 * H_pad)
    bytes_accessed = (x_p.size * 2 + we_p.size * 2 + wh_p.size * 2 + whd.size * 2
                      + be_p.size * 4 + bh_p.size * 4 + bhd.size * 4
                      + B_pad * 2 * 4)
    cost = pl.CostEstimate(flops=flops, transcendentals=2 * B_pad * 2,
                           bytes_accessed=bytes_accessed)

    # VMEM budget: resident weights + double-buffered x/out tiles + activations.
    weight_bytes = (we_p.size + wh_p.size + whd.size) * 2 \
                   + (be_p.size + bh_p.size + bhd.size) * 4
    act_bytes = 2 * (tb * E_pad * 2 + tb * 2 * 4) + 4 * tb * H_pad * 4
    vmem_est = weight_bytes + act_bytes
    vmem_limit = None
    if vmem_est > 14 * (1 << 20):          # only raise past the default scoped limit
        vmem_limit = int(min(vmem_est * 3 // 2, 40 * (1 << 20)))  # safe on v7x too

    out = pl.pallas_call(
        gaussian_mlp_kernel,
        out_shape=jax.ShapeDtypeStruct((B_pad, 2), jnp.float32),
        grid_spec=pltpu.PrefetchScalarGridSpec(
            num_scalar_prefetch=0,
            grid=grid,
            in_specs=[
                pl.BlockSpec((tb, E_pad), lambda i: (i, 0)),   # x tile over batch
                full((E_pad, H_pad)),                          # embedding W (bf16)
                full((1, H_pad)),                              # embedding b (f32)
                full((L, H_pad, H_pad)),                       # hidden Ws (bf16)
                full((L, 1, H_pad)),                           # hidden bs (f32)
                full((H_pad, 2)),                              # fused head W (bf16)
                full((1, 2)),                                  # fused head b (f32)
            ],
            out_specs=pl.BlockSpec((tb, 2), lambda i: (i, 0)), # fused mu|sigma
        ),
        compiler_params=pltpu.CompilerParams(
            dimension_semantics=("parallel",),
            vmem_limit_bytes=vmem_limit),
        cost_estimate=cost,
    )(x_p, we_p, be_p, wh_p, bh_p, whd, bhd)

    mu = out[:B, 0:1]
    sigma = out[:B, 1:2]
    return mu, sigma


def init_params(key, embedding_size, num_hidden, num_layer):
    ks = jax.random.split(key, 8)
    # deterministic small random init (shapes are torch.nn.Linear, transposed)
    we = jax.random.normal(ks[0], (embedding_size, num_hidden), jnp.float32) * 0.1
    be = jax.random.normal(ks[1], (1, num_hidden), jnp.float32) * 0.1
    wh = jax.random.normal(ks[2], (num_layer, num_hidden, num_hidden), jnp.float32) * 0.1
    bh = jax.random.normal(ks[3], (num_layer, 1, num_hidden), jnp.float32) * 0.1
    wmu = jax.random.normal(ks[4], (num_hidden, 1), jnp.float32) * 0.1
    bmu = jax.random.normal(ks[5], (1, 1), jnp.float32) * 0.1
    wsig = jax.random.normal(ks[6], (num_hidden, 1), jnp.float32) * 0.1
    bsig = jax.random.normal(ks[7], (1, 1), jnp.float32) * 0.1
    return (we, be, wh, bh, wmu, bmu, wsig, bsig)


def reference_forward(x, params):
    we, be, wh, bh, wmu, bmu, wsig, bsig = params
    h = x @ we + be
    for i in range(wh.shape[0]):
        h = jnp.maximum(h @ wh[i] + bh[i], 0.0)
    mu = h @ wmu + bmu
    sigma = jax.nn.softplus(h @ wsig + bsig) + 1e-6
    return mu, sigma


if __name__ == "__main__":
    embedding_size, num_hidden, num_layer = 16, 32, 2
    batch = 512  # gives grid=(4,) with batch_tile=128 -> real pipelining

    key = jax.random.PRNGKey(0)
    kx, kp = jax.random.split(key)
    x = jax.random.normal(kx, (batch, embedding_size), jnp.float32)
    params = init_params(kp, embedding_size, num_hidden, num_layer)

    mu, sigma = gaussian_mlp_forward(x, params, batch_tile=128)
    jax.block_until_ready((mu, sigma))

    mu_ref, sigma_ref = reference_forward(x, params)
    assert mu.shape == (batch, 1) and sigma.shape == (batch, 1)
    # bf16 MXU inputs -> relaxed tolerance vs the f32 reference
    assert jnp.allclose(mu, mu_ref, atol=5e-2, rtol=5e-2)
    assert jnp.allclose(sigma, sigma_ref, atol=5e-2, rtol=5e-2)
    assert bool(jnp.all(sigma > 0))

    print("KERNEL_OK")
</pallas_src>

<mosaic_0001>
module attributes {stable_mosaic.version = 11 : i64} {
  func.func @gaussian_mlp_kernel(%arg0: i32, %arg1: memref<128x128xbf16, #tpu.memory_space<vmem>>, %arg2: memref<128x128xbf16, #tpu.memory_space<vmem>>, %arg3: memref<1x128xf32, #tpu.memory_space<vmem>>, %arg4: memref<2x128x128xbf16, #tpu.memory_space<vmem>>, %arg5: memref<2x1x128xf32, #tpu.memory_space<vmem>>, %arg6: memref<128x2xbf16, #tpu.memory_space<vmem>>, %arg7: memref<1x2xf32, #tpu.memory_space<vmem>>, %arg8: memref<128x2xf32, #tpu.memory_space<vmem>>) attributes {dimension_semantics = [#tpu.dimension_semantics<parallel>], iteration_bounds = array<i64: 4>, scalar_prefetch = 0 : i64, scratch_operands = 0 : i64, tpu.core_type = #tpu.core_type<tc>, window_params = [{transform_indices = @transform_0, window_bounds = array<i64: 128, 128>}, {pipeline_mode = #tpu.pipeline_mode<synchronous>, transform_indices = @transform_1, window_bounds = array<i64: 128, 128>}, {pipeline_mode = #tpu.pipeline_mode<synchronous>, transform_indices = @transform_2, window_bounds = array<i64: 1, 128>}, {pipeline_mode = #tpu.pipeline_mode<synchronous>, transform_indices = @transform_3, window_bounds = array<i64: 2, 128, 128>}, {pipeline_mode = #tpu.pipeline_mode<synchronous>, transform_indices = @transform_4, window_bounds = array<i64: 2, 1, 128>}, {pipeline_mode = #tpu.pipeline_mode<synchronous>, transform_indices = @transform_5, window_bounds = array<i64: 128, 2>}, {pipeline_mode = #tpu.pipeline_mode<synchronous>, transform_indices = @transform_6, window_bounds = array<i64: 1, 2>}, {transform_indices = @transform_7, window_bounds = array<i64: 128, 2>}]} {
    %c0 = arith.constant 0 : index
    %c0_0 = arith.constant 0 : index
    %0 = vector.load %arg1[%c0, %c0_0] : memref<128x128xbf16, #tpu.memory_space<vmem>>, vector<128x128xbf16>
    %c0_1 = arith.constant 0 : index
    %c0_2 = arith.constant 0 : index
    %1 = vector.load %arg2[%c0_1, %c0_2] : memref<128x128xbf16, #tpu.memory_space<vmem>>, vector<128x128xbf16>
    %cst = arith.constant dense<0.000000e+00> : vector<128x128xf32>
    %2 = tpu.matmul %0, %1, %cst {dimension_numbers = #tpu.dot_dimension_numbers<[1], [0], [0], [1], [0, 0, 1, 1], [], []>} : vector<128x128xbf16>, vector<128x128xbf16>, vector<128x128xf32> -> vector<128x128xf32>
    %c0_3 = arith.constant 0 : index
    %c0_4 = arith.constant 0 : index
    %3 = vector.load %arg3[%c0_3, %c0_4] : memref<1x128xf32, #tpu.memory_space<vmem>>, vector<1x128xf32>
    %4 = vector.broadcast %3 : vector<1x128xf32> to vector<128x128xf32>
    %5 = arith.addf %2, %4 : vector<128x128xf32>
    %6 = arith.truncf %5 : vector<128x128xf32> to vector<128x128xbf16>
    %c0_5 = arith.constant 0 : index
    %c0_6 = arith.constant 0 : index
    %c0_7 = arith.constant 0 : index
    %7 = vector.load %arg4[%c0_5, %c0_6, %c0_7] : memref<2x128x128xbf16, #tpu.memory_space<vmem>>, vector<1x128x128xbf16>
    %8 = vector.shape_cast %7 : vector<1x128x128xbf16> to vector<128x128xbf16>
    %cst_8 = arith.constant dense<0.000000e+00> : vector<128x128xf32>
    %9 = tpu.matmul %6, %8, %cst_8 {dimension_numbers = #tpu.dot_dimension_numbers<[1], [0], [0], [1], [0, 0, 1, 1], [], []>} : vector<128x128xbf16>, vector<128x128xbf16>, vector<128x128xf32> -> vector<128x128xf32>
    %c0_9 = arith.constant 0 : index
    %c0_10 = arith.constant 0 : index
    %c0_11 = arith.constant 0 : index
    %10 = vector.load %arg5[%c0_9, %c0_10, %c0_11] : memref<2x1x128xf32, #tpu.memory_space<vmem>>, vector<1x1x128xf32>
    %11 = vector.shape_cast %10 : vector<1x1x128xf32> to vector<1x128xf32>
    %12 = vector.broadcast %11 : vector<1x128xf32> to vector<128x128xf32>
    %13 = arith.addf %9, %12 : vector<128x128xf32>
    %cst_12 = arith.constant 0.000000e+00 : f32
    %14 = vector.broadcast %cst_12 : f32 to vector<128x128xf32>
    %15 = arith.maximumf %13, %14 : vector<128x128xf32>
    %16 = arith.truncf %15 : vector<128x128xf32> to vector<128x128xbf16>
    %c1 = arith.constant 1 : index
    %c0_13 = arith.constant 0 : index
    %c0_14 = arith.constant 0 : index
    %17 = vector.load %arg4[%c1, %c0_13, %c0_14] : memref<2x128x128xbf16, #tpu.memory_space<vmem>>, vector<1x128x128xbf16>
    %18 = vector.shape_cast %17 : vector<1x128x128xbf16> to vector<128x128xbf16>
    %cst_15 = arith.constant dense<0.000000e+00> : vector<128x128xf32>
    %19 = tpu.matmul %16, %18, %cst_15 {dimension_numbers = #tpu.dot_dimension_numbers<[1], [0], [0], [1], [0, 0, 1, 1], [], []>} : vector<128x128xbf16>, vector<128x128xbf16>, vector<128x128xf32> -> vector<128x128xf32>
    %c1_16 = arith.constant 1 : index
    %c0_17 = arith.constant 0 : index
    %c0_18 = arith.constant 0 : index
    %20 = vector.load %arg5[%c1_16, %c0_17, %c0_18] : memref<2x1x128xf32, #tpu.memory_space<vmem>>, vector<1x1x128xf32>
    %21 = vector.shape_cast %20 : vector<1x1x128xf32> to vector<1x128xf32>
    %22 = vector.broadcast %21 : vector<1x128xf32> to vector<128x128xf32>
    %23 = arith.addf %19, %22 : vector<128x128xf32>
    %cst_19 = arith.constant 0.000000e+00 : f32
    %24 = vector.broadcast %cst_19 : f32 to vector<128x128xf32>
    %25 = arith.maximumf %23, %24 : vector<128x128xf32>
    %26 = arith.truncf %25 : vector<128x128xf32> to vector<128x128xbf16>
    %c0_20 = arith.constant 0 : index
    %c0_21 = arith.constant 0 : index
    %27 = vector.load %arg6[%c0_20, %c0_21] : memref<128x2xbf16, #tpu.memory_space<vmem>>, vector<128x2xbf16>
    %cst_22 = arith.constant dense<0.000000e+00> : vector<128x2xf32>
    %28 = tpu.matmul %26, %27, %cst_22 {dimension_numbers = #tpu.dot_dimension_numbers<[1], [0], [0], [1], [0, 0, 1, 1], [], []>} : vector<128x128xbf16>, vector<128x2xbf16>, vector<128x2xf32> -> vector<128x2xf32>
    %c0_23 = arith.constant 0 : index
    %c0_24 = arith.constant 0 : index
    %29 = vector.load %arg7[%c0_23, %c0_24] : memref<1x2xf32, #tpu.memory_space<vmem>>, vector<1x2xf32>
    %30 = vector.broadcast %29 : vector<1x2xf32> to vector<128x2xf32>
    %31 = arith.addf %28, %30 : vector<128x2xf32>
    %cst_25 = arith.constant 0.000000e+00 : f32
    %32 = vector.broadcast %cst_25 : f32 to vector<128x2xf32>
    %33 = arith.maximumf %31, %32 : vector<128x2xf32>
    %34 = math.absf %31 : vector<128x2xf32>
    %cst_26 = arith.constant 0.000000e+00 : f32
    %35 = vector.broadcast %cst_26 : f32 to vector<128x2xf32>
    %36 = arith.subf %35, %34 : vector<128x2xf32>
    %37 = math.exp %36 : vector<128x2xf32>
    %38 = math.log1p %37 : vector<128x2xf32>
    %39 = arith.addf %33, %38 : vector<128x2xf32>
    %40 = tpu.iota {dimensions = array<i32: 1>} : vector<128x2xi32>
    %c0_i32 = arith.constant 0 : i32
    %41 = vector.broadcast %c0_i32 : i32 to vector<128x2xi32>
    %42 = arith.cmpi eq, %40, %41 : vector<128x2xi32>
    %cst_27 = arith.constant 9.99999997E-7 : f32
    %43 = vector.broadcast %cst_27 : f32 to vector<128x2xf32>
    %44 = arith.addf %39, %43 : vector<128x2xf32>
    %45 = arith.select %42, %31, %44 : vector<128x2xi1>, vector<128x2xf32>
    %c0_28 = arith.constant 0 : index
    %c0_29 = arith.constant 0 : index
    %46 = vector.load %arg8[%c0_28, %c0_29] : memref<128x2xf32, #tpu.memory_space<vmem>>, vector<128x2xf32>
    tpu.vector_store %arg8[%c0_28, %c0_29], %45 {strides = array<i32>} : memref<128x2xf32, #tpu.memory_space<vmem>>, vector<128x2xf32>,
    return
  }
  func.func @transform_0(%arg0: i32) -> (i32, i32) {
    %c0_i32 = arith.constant 0 : i32
    %c0_i32_0 = arith.constant 0 : i32
    return %arg0, %c0_i32 : i32, i32
  }
  func.func @transform_1(%arg0: i32) -> (i32, i32) {
    %c0_i32 = arith.constant 0 : i32
    %c0_i32_0 = arith.constant 0 : i32
    %c0_i32_1 = arith.constant 0 : i32
    return %c0_i32, %c0_i32_0 : i32, i32
  }
  func.func @transform_2(%arg0: i32) -> (i32, i32) {
    %c0_i32 = arith.constant 0 : i32
    %c0_i32_0 = arith.constant 0 : i32
    %c0_i32_1 = arith.constant 0 : i32
    return %c0_i32, %c0_i32_0 : i32, i32
  }
  func.func @transform_3(%arg0: i32) -> (i32, i32, i32) {
    %c0_i32 = arith.constant 0 : i32
    %c0_i32_0 = arith.constant 0 : i32
    %c0_i32_1 = arith.constant 0 : i32
    %c0_i32_2 = arith.constant 0 : i32
    return %c0_i32, %c0_i32_0, %c0_i32_1 : i32, i32, i32
  }
  func.func @transform_4(%arg0: i32) -> (i32, i32, i32) {
    %c0_i32 = arith.constant 0 : i32
    %c0_i32_0 = arith.constant 0 : i32
    %c0_i32_1 = arith.constant 0 : i32
    %c0_i32_2 = arith.constant 0 : i32
    return %c0_i32, %c0_i32_0, %c0_i32_1 : i32, i32, i32
  }
  func.func @transform_5(%arg0: i32) -> (i32, i32) {
    %c0_i32 = arith.constant 0 : i32
    %c0_i32_0 = arith.constant 0 : i32
    %c0_i32_1 = arith.constant 0 : i32
    return %c0_i32, %c0_i32_0 : i32, i32
  }
  func.func @transform_6(%arg0: i32) -> (i32, i32) {
    %c0_i32 = arith.constant 0 : i32
    %c0_i32_0 = arith.constant 0 : i32
    %c0_i32_1 = arith.constant 0 : i32
    return %c0_i32, %c0_i32_0 : i32, i32
  }
  func.func @transform_7(%arg0: i32) -> (i32, i32) {
    %c0_i32 = arith.constant 0 : i32
    %c0_i32_0 = arith.constant 0 : i32
    return %arg0, %c0_i32 : i32, i32
  }
}

</mosaic_0001>

<llo_original>
// kernel: tpu_custom_call.1
$region0: #{tpu_custom_call.1}
  #allocation0 [shape = 'u32[]', space=smem, size = 0x4, offset = 0x4, fixed_abs, tag = 'smem constant byte address 0x4 - core index']
  #allocation1 [shape = 'u32[144,128]{1,0:T(1,128)}', space=vmem, size = 0x12000, scoped, tag = 'internal scratch']
  %s0 = inlined_call_operand.hbm [shape: bf16[512,128], index: 0, kind: input, shape index: {}]
  %s1 = inlined_call_operand.vmem [shape: bf16[128,128], index: 1, kind: input, shape index: {}]
  %s2 = inlined_call_operand.vmem [shape: f32[1,128], index: 2, kind: input, shape index: {}]
  %s3 = inlined_call_operand.hbm [shape: bf16[2,128,128], index: 3, kind: input, shape index: {}]
  %s4 = inlined_call_operand.vmem [shape: f32[2,1,128], index: 4, kind: input, shape index: {}]
  %s5 = inlined_call_operand.vmem [shape: bf16[128,2], index: 5, kind: input, shape index: {}]
  %s6 = inlined_call_operand.vmem [shape: f32[1,2], index: 6, kind: input, shape index: {}]
  %s7 = inlined_call_operand.vmem [shape: f32[512,2], index: 7, kind: output, shape index: {}]
  %s8 = sld [smem:[#allocation0]]
  $region69: #{tpu_custom_call.1} parent=0
    _
  %s10 = ssub.s32 1, %s8
  %s11 = scalar_select 0, %s10, %s8
  $region1: #{tpu_custom_call.1} parent=0
    #allocation2 [shape = 'u8[65536]{0}', space=vmem, size = 0x10000, scoped, tag = 'input window, operand 0']
    #allocation3 [shape = 's32[2]{0}', space=sflag, size = 0x8, scoped, tag = 'scoped memory for tpu_custom_call.1']
    #allocation4 [shape = 'u8[65536]{0}', space=vmem, size = 0x10000, scoped, tag = 'input window, operand 3, single buffered']
    #allocation5 [shape = 's32[1]{0}', space=sflag, size = 0x4, scoped, tag = 'scoped memory for tpu_custom_call.1']
    %12 = vsyncpa [#allocation3], 0
    %s13 = scalar_lea.sflag [#allocation3], 1
    %14 = vsyncpa %s13, 0
    %15 = vsyncpa [#allocation5], 0
    loop: start=0, step=1, limit=6
    $region2: #{tpu_custom_call.1} parent=1 // loop_pre_header
      _
    $region3: #{tpu_custom_call.1} parent=1 // loop_header
      %s17 = sphi 0, %s21
      %p18 = scmp.ge.s32.totalorder %s17, 6
      %s27 = sphi 0, %s29
      %s30 = sphi 0, %s27
      %s31 = sphi 0, %s30
      %s47 = sphi 0, %s31
      %s51 = sphi 0, %s51
      %s53 = sphi 0, %s51
      %s54 = sphi 0, %s53
      %s68 = sphi 0, %s54
      %s72 = sphi 0, %s72
      %s74 = sphi 0, %s72
      %s75 = sphi 0, %s74
      %s89 = sphi 0, %s75
      %s93 = sphi 0, %s93
      %s95 = sphi 0, %s93
      %s96 = sphi 0, %s95
      %s110 = sphi 0, %s96
      %s114 = sphi 0, %s114
      %s116 = sphi 0, %s114
      %s117 = sphi 0, %s116
      %s131 = sphi 0, %s117
      %s135 = sphi 0, %s135
      %s137 = sphi 0, %s135
      %s138 = sphi 0, %s137
      %s152 = sphi 0, %s138
      %s156 = sphi 0, %s156
      %s158 = sphi 0, %s156
      %s159 = sphi 0, %s158
      %s173 = sphi 0, %s159
      %s179 = sphi 0, %s181
      %s182 = sphi 0, %s179
      %s183 = sphi 0, %s182
      %s199 = sphi 0, %s183
    $region4: #{tpu_custom_call.1} parent=1 // loop_header_branch
      %20 = sbr.rel (%p18) target = $region8
    $region5: #{tpu_custom_call.1} parent=1 // loop_body
      %s22 = ssub.s32 %s17, 1
      %s23 = ssub.s32 %s17, 2
      %s24 = sadd.s32 %s17, 1
      %s25 = ssub.s32 %s17, %s24
      %p26 = scmp.eq.s32.totalorder %s25, 0
      %s28 = sadd.s32 %s27, 1
      %s29 = scalar_select %p26, %s27, %s28
      %p32 = pneg %p26
      %p33 = scmp.eq.s32.totalorder %s17, 3
      %p34 = por %p32, %p33
      %p35 = scmp.ne.s32.totalorder %s27, %s30
      %p36 = scmp.eq.s32.totalorder %s17, 0
      %p37 = por %p35, %p36
      %p38 = scmp.ne.s32.totalorder %s27, %s30
      %p39 = scmp.eq.s32.totalorder %s22, 3
      %p40 = por %p38, %p39
      %p41 = scmp.ne.s32.totalorder %s30, %s31
      %p42 = scmp.eq.s32.totalorder %s22, 0
      %p43 = por %p41, %p42
      %p44 = scmp.ne.s32.totalorder %s30, %s31
      %p45 = scmp.eq.s32.totalorder %s23, 3
      %p46 = por %p44, %p45
      %p48 = scmp.ne.s32.totalorder %s31, %s47
      %p49 = scmp.eq.s32.totalorder %s23, 0
      %p50 = por %p48, %p49
      %s52 = sadd.s32 %s51, 1
      %p55 = scmp.eq.s32.totalorder %s17, 3
      %p56 = scmp.ne.s32.totalorder %s51, %s53
      %p57 = scmp.eq.s32.totalorder %s17, 0
      %p58 = por %p56, %p57
      %p59 = scmp.ne.s32.totalorder %s51, %s53
      %p60 = scmp.eq.s32.totalorder %s22, 3
      %p61 = por %p59, %p60
      %p62 = scmp.ne.s32.totalorder %s53, %s54
      %p63 = scmp.eq.s32.totalorder %s22, 0
      %p64 = por %p62, %p63
      %p65 = scmp.ne.s32.totalorder %s53, %s54
      %p66 = scmp.eq.s32.totalorder %s23, 3
      %p67 = por %p65, %p66
      %p69 = scmp.ne.s32.totalorder %s54, %s68
      %p70 = scmp.eq.s32.totalorder %s23, 0
      %p71 = por %p69, %p70
      %s73 = sadd.s32 %s72, 1
      %p76 = scmp.eq.s32.totalorder %s17, 3
      %p77 = scmp.ne.s32.totalorder %s72, %s74
      %p78 = scmp.eq.s32.totalorder %s17, 0
      %p79 = por %p77, %p78
      %p80 = scmp.ne.s32.totalorder %s72, %s74
      %p81 = scmp.eq.s32.totalorder %s22, 3
      %p82 = por %p80, %p81
      %p83 = scmp.ne.s32.totalorder %s74, %s75
      %p84 = scmp.eq.s32.totalorder %s22, 0
      %p85 = por %p83, %p84
      %p86 = scmp.ne.s32.totalorder %s74, %s75
      %p87 = scmp.eq.s32.totalorder %s23, 3
      %p88 = por %p86, %p87
      %p90 = scmp.ne.s32.totalorder %s75, %s89
      %p91 = scmp.eq.s32.totalorder %s23, 0
      %p92 = por %p90, %p91
      %s94 = sadd.s32 %s93, 1
      %p97 = scmp.eq.s32.totalorder %s17, 3
      %p98 = scmp.ne.s32.totalorder %s93, %s95
      %p99 = scmp.eq.s32.totalorder %s17, 0
      %p100 = por %p98, %p99
      %p101 = scmp.ne.s32.totalorder %s93, %s95
      %p102 = scmp.eq.s32.totalorder %s22, 3
      %p103 = por %p101, %p102
      %p104 = scmp.ne.s32.totalorder %s95, %s96
      %p105 = scmp.eq.s32.totalorder %s22, 0
      %p106 = por %p104, %p105
      %p107 = scmp.ne.s32.totalorder %s95, %s96
      %p108 = scmp.eq.s32.totalorder %s23, 3
      %p109 = por %p107, %p108
      %p111 = scmp.ne.s32.totalorder %s96, %s110
      %p112 = scmp.eq.s32.totalorder %s23, 0
      %p113 = por %p111, %p112
      %s115 = sadd.s32 %s114, 1
      %p118 = scmp.eq.s32.totalorder %s17, 3
      %p119 = scmp.ne.s32.totalorder %s114, %s116
      %p120 = scmp.eq.s32.totalorder %s17, 0
      %p121 = por %p119, %p120
      %p122 = scmp.ne.s32.totalorder %s114, %s116
      %p123 = scmp.eq.s32.totalorder %s22, 3
      %p124 = por %p122, %p123
      %p125 = scmp.ne.s32.totalorder %s116, %s117
      %p126 = scmp.eq.s32.totalorder %s22, 0
      %p127 = por %p125, %p126
      %p128 = scmp.ne.s32.totalorder %s116, %s117
      %p129 = scmp.eq.s32.totalorder %s23, 3
      %p130 = por %p128, %p129
      %p132 = scmp.ne.s32.totalorder %s117, %s131
      %p133 = scmp.eq.s32.totalorder %s23, 0
      %p134 = por %p132, %p133
      %s136 = sadd.s32 %s135, 1
      %p139 = scmp.eq.s32.totalorder %s17, 3
      %p140 = scmp.ne.s32.totalorder %s135, %s137
      %p141 = scmp.eq.s32.totalorder %s17, 0
      %p142 = por %p140, %p141
      %p143 = scmp.ne.s32.totalorder %s135, %s137
      %p144 = scmp.eq.s32.totalorder %s22, 3
      %p145 = por %p143, %p144
      %p146 = scmp.ne.s32.totalorder %s137, %s138
      %p147 = scmp.eq.s32.totalorder %s22, 0
      %p148 = por %p146, %p147
      %p149 = scmp.ne.s32.totalorder %s137, %s138
      %p150 = scmp.eq.s32.totalorder %s23, 3
      %p151 = por %p149, %p150
      %p153 = scmp.ne.s32.totalorder %s138, %s152
      %p154 = scmp.eq.s32.totalorder %s23, 0
      %p155 = por %p153, %p154
      %s157 = sadd.s32 %s156, 1
      %p160 = scmp.eq.s32.totalorder %s17, 3
      %p161 = scmp.ne.s32.totalorder %s156, %s158
      %p162 = scmp.eq.s32.totalorder %s17, 0
      %p163 = por %p161, %p162
      %p164 = scmp.ne.s32.totalorder %s156, %s158
      %p165 = scmp.eq.s32.totalorder %s22, 3
      %p166 = por %p164, %p165
      %p167 = scmp.ne.s32.totalorder %s158, %s159
      %p168 = scmp.eq.s32.totalorder %s22, 0
      %p169 = por %p167, %p168
      %p170 = scmp.ne.s32.totalorder %s158, %s159
      %p171 = scmp.eq.s32.totalorder %s23, 3
      %p172 = por %p170, %p171
      %p174 = scmp.ne.s32.totalorder %s159, %s173
      %p175 = scmp.eq.s32.totalorder %s23, 0
      %p176 = por %p174, %p175
      %s177 = ssub.s32 %s17, %s24
      %p178 = scmp.eq.s32.totalorder %s177, 0
      %s180 = sadd.s32 %s179, 1
      %s181 = scalar_select %p178, %s179, %s180
      %p184 = pneg %p178
      %p185 = scmp.eq.s32.totalorder %s17, 3
      %p186 = por %p184, %p185
      %p187 = scmp.ne.s32.totalorder %s179, %s182
      %p188 = scmp.eq.s32.totalorder %s17, 0
      %p189 = por %p187, %p188
      %p190 = scmp.ne.s32.totalorder %s179, %s182
      %p191 = scmp.eq.s32.totalorder %s22, 3
      %p192 = por %p190, %p191
      %p193 = scmp.ne.s32.totalorder %s182, %s183
      %p194 = scmp.eq.s32.totalorder %s22, 0
      %p195 = por %p193, %p194
      %p196 = scmp.ne.s32.totalorder %s182, %s183
      %p197 = scmp.eq.s32.totalorder %s23, 3
      %p198 = por %p196, %p197
      %p200 = scmp.ne.s32.totalorder %s183, %s199
      %p201 = scmp.eq.s32.totalorder %s23, 0
      %p202 = por %p200, %p201
      %p203 = scmp.le.s32.totalorder 1, %s17
      %p204 = scmp.lt.s32.totalorder %s17, 5
      %p205 = pnand %p203, %p204
      %p206 = pneg %p205
      // Predicated region
      $region9: #{tpu_custom_call.1} parent=5 // pred_check
        _
      $region10: #{tpu_custom_call.1} parent=5 // pred_check_branch
        %208 = sbr.rel (%p205) target = $region12
      $region11: #{tpu_custom_call.1} parent=5 // pred_region
        %s209 = ssub.s32 %s17, 1
        // Predicated region
        $region13: #{tpu_custom_call.1} parent=11 // pred_check
          %p210 = pneg %p64
        $region14: #{tpu_custom_call.1} parent=11 // pred_check_branch
          %212 = sbr.rel (%p210) target = $region16
        $region15: #{tpu_custom_call.1} parent=11 // pred_region
          _
        $region16: #{tpu_custom_call.1} parent=11 // pred_fallthru
          _
        // Predicated region
        $region17: #{tpu_custom_call.1} parent=11 // pred_check
          %p213 = pneg %p85
        $region18: #{tpu_custom_call.1} parent=11 // pred_check_branch
          %215 = sbr.rel (%p213) target = $region20
        $region19: #{tpu_custom_call.1} parent=11 // pred_region
          _
        $region20: #{tpu_custom_call.1} parent=11 // pred_fallthru
          _
        // Predicated region
        $region21: #{tpu_custom_call.1} parent=11 // pred_check
          %p216 = pneg %p106
        $region22: #{tpu_custom_call.1} parent=11 // pred_check_branch
          %218 = sbr.rel (%p216) target = $region24
        $region23: #{tpu_custom_call.1} parent=11 // pred_region
          %s220 = ssub.s32 2048, 2048
          %221 = vsyncadd [#allocation5], %s220
          %s222 = sshll.u32 [#allocation4], 4
          %s223 = int_to_ptr.vmem [resolvable:$true] %s222
          %228 = dma.hbm_to_vmem [thread:$0]  %s3, 2048, %s223, [#allocation5], 64, 64, 4
        $region24: #{tpu_custom_call.1} parent=11 // pred_fallthru
          _
        // Predicated region
        $region25: #{tpu_custom_call.1} parent=11 // pred_check
          %p229 = pneg %p127
        $region26: #{tpu_custom_call.1} parent=11 // pred_check_branch
          %231 = sbr.rel (%p229) target = $region28
        $region27: #{tpu_custom_call.1} parent=11 // pred_region
          _
        $region28: #{tpu_custom_call.1} parent=11 // pred_fallthru
          _
        // Predicated region
        $region29: #{tpu_custom_call.1} parent=11 // pred_check
          %p232 = pneg %p148
        $region30: #{tpu_custom_call.1} parent=11 // pred_check_branch
          %234 = sbr.rel (%p232) target = $region32
        $region31: #{tpu_custom_call.1} parent=11 // pred_region
          _
        $region32: #{tpu_custom_call.1} parent=11 // pred_fallthru
          _
        // Predicated region
        $region33: #{tpu_custom_call.1} parent=11 // pred_check
          %p235 = pneg %p169
        $region34: #{tpu_custom_call.1} parent=11 // pred_check_branch
          %237 = sbr.rel (%p235) target = $region36
        $region35: #{tpu_custom_call.1} parent=11 // pred_region
          _
        $region36: #{tpu_custom_call.1} parent=11 // pred_fallthru
          _
      $region12: #{tpu_custom_call.1} parent=5 // pred_fallthru
        _
      %p238 = scmp.lt.s32.totalorder %s17, 4
      // Predicated region
      $region37: #{tpu_custom_call.1} parent=5 // pred_check
        %p239 = pneg %p238
      $region38: #{tpu_custom_call.1} parent=5 // pred_check_branch
        %241 = sbr.rel (%p239) target = $region40
      $region39: #{tpu_custom_call.1} parent=5 // pred_region
        // Predicated region
        $region41: #{tpu_custom_call.1} parent=39 // pred_check
          %p242 = pneg %p37
        $region42: #{tpu_custom_call.1} parent=39 // pred_check_branch
          %244 = sbr.rel (%p242) target = $region44
        $region43: #{tpu_custom_call.1} parent=39 // pred_region
          %s245 = sand.u32 %s27, 1
          %s246 = scalar_lea.sflag [#allocation3], %s245
          %s247 = sand.u32 %s27, 1
          %s248 = smul.addr %s247, 64
          %s249 = scalar_lea.vmem [#allocation2], %s248
          %s250 = smul.u32 16, %s17
          %s252 = ssub.s32 1024, 1024
          %253 = vsyncadd %s246, %s252
          %s254 = smul.addr %s250, 64
          %s255 = scalar_lea.hbm %s0, %s254
          %s256 = sshll.u32 %s249, 4
          %s257 = int_to_ptr.vmem [resolvable:$true] %s256
          %262 = dma.hbm_to_vmem [thread:$0]  %s255, 1024, %s257, %s246, 64, 64, 4
        $region44: #{tpu_custom_call.1} parent=39 // pred_fallthru
          _
      $region40: #{tpu_custom_call.1} parent=5 // pred_fallthru
        _
      %p263 = scmp.le.s32.totalorder 1, %s17
      %p264 = scmp.lt.s32.totalorder %s17, 5
      %p265 = pnand %p263, %p264
      %p266 = pneg %p265
      // Predicated region
      $region45: #{tpu_custom_call.1} parent=5 // pred_check
        _
      $region46: #{tpu_custom_call.1} parent=5 // pred_check_branch
        %268 = sbr.rel (%p265) target = $region48
      $region47: #{tpu_custom_call.1} parent=5 // pred_region
        %s269 = ssub.s32 %s17, 1
        %s270 = sand.u32 %s30, 1
        %s271 = scalar_lea.sflag [#allocation3], %s270
        %s272 = sand.u32 %s30, 1
        %s273 = smul.addr %s272, 64
        %s274 = scalar_lea.vmem [#allocation2], %s273
        // Predicated region
        $region49: #{tpu_custom_call.1} parent=47 // pred_check
          %p275 = pneg %p43
        $region50: #{tpu_custom_call.1} parent=47 // pred_check_branch
          %277 = sbr.rel (%p275) target = $region52
        $region51: #{tpu_custom_call.1} parent=47 // pred_region
          %278 = dma.done %s271, 1024
        $region52: #{tpu_custom_call.1} parent=47 // pred_fallthru
          _
        // Predicated region
        $region53: #{tpu_custom_call.1} parent=47 // pred_check
          %p279 = pneg %p106
        $region54: #{tpu_custom_call.1} parent=47 // pred_check_branch
          %281 = sbr.rel (%p279) target = $region56
        $region55: #{tpu_custom_call.1} parent=47 // pred_region
          %282 = dma.done [#allocation5], 2048
        $region56: #{tpu_custom_call.1} parent=47 // pred_fallthru
          _
        %s283 = sand.u32 %s30, 1
        %s284 = scalar_lea.sflag [#allocation3], %s283
        %s285 = sand.u32 %s30, 1
        %s286 = smul.addr %s285, 64
        %s287 = scalar_lea.vmem [#allocation2], %s286
        %p288 = pneg %p43
        %p289 = pneg %p40
        %p290 = pneg %p64
        %p291 = pneg %p61
        %p292 = pneg %p85
        %p293 = pneg %p82
        %p294 = pneg %p106
        %p295 = pneg %p103
        %p296 = pneg %p127
        %p297 = pneg %p124
        %p298 = pneg %p148
        %p299 = pneg %p145
        %p300 = pneg %p169
        %p301 = pneg %p166
        %p302 = pneg %p195
        %p303 = pneg %p192
        %s304 = smul.u32 16, %s22
        %p305 = scmp.lt.s32.totalorder %s304, 63
        %s306 = scalar_select %p305, %s304, 63
        %s307 = smul.addr %s306, 8
        %s308 = scalar_lea.vmem %s7, %s307
        %s309 = smul.u32 16, %s22
        %s310 = smul.u32 16, %s22
        %p311 = scmp.lt.s32.totalorder %s310, 63
        %s312 = scalar_select %p311, %s310, 63
        %s313 = smul.addr %s312, 8
        %s314 = scalar_lea.vmem %s7, %s313
        %s315 = smul.u32 16, %s22
        %v317 = vld [vmem:[%s274] sm:$0xf]
        %v318 = vld [vmem:[%s274 + $0x4] sm:$0xf]
        %v319 = vld [vmem:[%s274 + $0x8] sm:$0xf]
        %v320 = vld [vmem:[%s274 + $0xc] sm:$0xf]
        %v321 = vld [vmem:[%s274 + $0x10] sm:$0xf]
        %v322 = vld [vmem:[%s274 + $0x14] sm:$0xf]
        %v323 = vld [vmem:[%s274 + $0x18] sm:$0xf]
        %v324 = vld [vmem:[%s274 + $0x1c] sm:$0xf]
        %v325 = vld [vmem:[%s274 + $0x20] sm:$0xf]
        %v326 = vld [vmem:[%s274 + $0x24] sm:$0xf]
        %v327 = vld [vmem:[%s274 + $0x28] sm:$0xf]
        %v328 = vld [vmem:[%s274 + $0x2c] sm:$0xf]
        %v329 = vld [vmem:[%s274 + $0x30] sm:$0xf]
        %v330 = vld [vmem:[%s274 + $0x34] sm:$0xf]
        %v331 = vld [vmem:[%s274 + $0x38] sm:$0xf]
        %v332 = vld [vmem:[%s274 + $0x3c] sm:$0xf]
        %v333 = vld [vmem:[%s1] sm:$0xf]
        %v334 = vld [vmem:[%s1 + $0x4] sm:$0xf]
        %v335 = vld [vmem:[%s1 + $0x8] sm:$0xf]
        %v336 = vld [vmem:[%s1 + $0xc] sm:$0xf]
        %v337 = vld [vmem:[%s1 + $0x10] sm:$0xf]
        %v338 = vld [vmem:[%s1 + $0x14] sm:$0xf]
        %v339 = vld [vmem:[%s1 + $0x18] sm:$0xf]
        %v340 = vld [vmem:[%s1 + $0x1c] sm:$0xf]
        %v341 = vld [vmem:[%s1 + $0x20] sm:$0xf]
        %v342 = vld [vmem:[%s1 + $0x24] sm:$0xf]
        %v343 = vld [vmem:[%s1 + $0x28] sm:$0xf]
        %v344 = vld [vmem:[%s1 + $0x2c] sm:$0xf]
        %v345 = vld [vmem:[%s1 + $0x30] sm:$0xf]
        %v346 = vld [vmem:[%s1 + $0x34] sm:$0xf]
        %v347 = vld [vmem:[%s1 + $0x38] sm:$0xf]
        %v348 = vld [vmem:[%s1 + $0x3c] sm:$0xf]
        %v349 = vld [vmem:[%s2] sm:$0x1]
        %v351 = vlaneseq
        %v352 = vshrl.u32 %v351, 7
        %v353 = vsub.s32 0, %v352
        %v354 = vrot.slane %v349, %v353
        %v372 = vunpack.c.l.b16 %v317
        %v373 = vunpack.c.l.b16 %v318
        %v374 = vunpack.c.l.b16 %v319
        %v375 = vunpack.c.l.b16 %v320
        %v376 = vunpack.c.l.b16 %v321
        %v377 = vunpack.c.l.b16 %v322
        %v378 = vunpack.c.l.b16 %v323
        %v379 = vunpack.c.l.b16 %v324
        %v380 = vunpack.c.l.b16 %v325
        %v381 = vunpack.c.l.b16 %v326
        %v382 = vunpack.c.l.b16 %v327
        %v383 = vunpack.c.l.b16 %v328
        %v384 = vunpack.c.l.b16 %v329
        %v385 = vunpack.c.l.b16 %v330
        %v386 = vunpack.c.l.b16 %v331
        %v387 = vunpack.c.l.b16 %v332
        %v388 = vpack.c.b16 %v373, %v372
        %v389 = vpack.c.b16 %v375, %v374
        %v390 = vpack.c.b16 %v377, %v376
        %v391 = vpack.c.b16 %v379, %v378
        %v392 = vpack.c.b16 %v381, %v380
        %v393 = vpack.c.b16 %v383, %v382
        %v394 = vpack.c.b16 %v385, %v384
        %v395 = vpack.c.b16 %v387, %v386
        %v420 = vunpack.c.l.b16 %v333
        %v421 = vunpack.c.l.b16 %v334
        %v422 = vunpack.c.l.b16 %v335
        %v423 = vunpack.c.l.b16 %v336
        %v424 = vunpack.c.l.b16 %v337
        %v425 = vunpack.c.l.b16 %v338
        %v426 = vunpack.c.l.b16 %v339
        %v427 = vunpack.c.l.b16 %v340
        %v428 = vunpack.c.l.b16 %v341
        %v429 = vunpack.c.l.b16 %v342
        %v430 = vunpack.c.l.b16 %v343
        %v431 = vunpack.c.l.b16 %v344
        %v432 = vunpack.c.l.b16 %v345
        %v433 = vunpack.c.l.b16 %v346
        %v434 = vunpack.c.l.b16 %v347
        %v435 = vunpack.c.l.b16 %v348
        %v436 = vpack.c.b16 %v421, %v420
        %v437 = vpack.c.b16 %v423, %v422
        %v438 = vpack.c.b16 %v425, %v424
        %v439 = vpack.c.b16 %v427, %v426
        %v440 = vpack.c.b16 %v429, %v428
        %v441 = vpack.c.b16 %v431, %v430
        %v442 = vpack.c.b16 %v433, %v432
        %v443 = vpack.c.b16 %v435, %v434
        %452 = vmatprep.subr.bf16.mxu0 0
        %453 = vmatpush1.bf16.msra.mxu0 %v436
        %454 = vmatprep.subr.bf16.mxu0 0
        %455 = vmatpush1.bf16.msra.mxu0 %v437
        %456 = vmatprep.subr.bf16.mxu0 0
        %457 = vmatpush1.bf16.msra.mxu0 %v438
        %458 = vmatprep.subr.bf16.mxu0 0
        %459 = vmatpush1.bf16.msra.mxu0 %v439
        %460 = vmatprep.subr.bf16.mxu0 0
        %461 = vmatpush1.bf16.msra.mxu0 %v440
        %462 = vmatprep.subr.bf16.mxu0 0
        %463 = vmatpush1.bf16.msra.mxu0 %v441
        %464 = vmatprep.subr.bf16.mxu0 0
        %465 = vmatpush1.bf16.msra.mxu0 %v442
        %466 = vmatprep.subr.bf16.mxu0 0
        %467 = vmatpush1.bf16.msra.mxu0 %v443
        %468 = vmatprep.subr.bf16.mxu0 0
        %469 = vmatpush1.bf16.msra.mxu0 0
        %470 = vmatprep.subr.bf16.mxu0 0
        %471 = vmatpush1.bf16.msra.mxu0 0
        %472 = vmatprep.subr.bf16.mxu0 0
        %473 = vmatpush1.bf16.msra.mxu0 0
        %474 = vmatprep.subr.bf16.mxu0 0
        %475 = vmatpush1.bf16.msra.mxu0 0
        %476 = vmatprep.subr.bf16.mxu0 0
        %477 = vmatpush1.bf16.msra.mxu0 0
        %478 = vmatprep.subr.bf16.mxu0 0
        %479 = vmatpush1.bf16.msra.mxu0 0
        %480 = vmatprep.subr.bf16.mxu0 0
        %481 = vmatpush1.bf16.msra.mxu0 0
        %482 = vmatprep.subr.bf16.mxu0 0
        %483 = vmatpush1.bf16.msra.mxu0 0
        %484 = vmatprep.mubr.bf16.mxu0 0
        %485 = vmatmul.mubr.bf16.gmra.mrb[0].mxu0 %v388
        %v486 = vpop.f32.mrb[0].mxu0
        %v487 = vadd.f32 %v354, %v486
        %v488 = vpop.f32.mrb[0].mxu0
        %v489 = vpop.f32.mrb[0].mxu0
        %v490 = vadd.f32 %v354, %v489
        %v491 = vpop.f32.mrb[0].mxu0
        %492 = vmatprep.mubr.bf16.mxu0 0
        %493 = vmatmul.mubr.bf16.gmra.mrb[0].mxu0 %v389
        %v494 = vpop.f32.mrb[0].mxu0
        %v495 = vadd.f32 %v354, %v494
        %v496 = vpop.f32.mrb[0].mxu0
        %v497 = vpop.f32.mrb[0].mxu0
        %v498 = vadd.f32 %v354, %v497
        %v499 = vpop.f32.mrb[0].mxu0
        %500 = vmatprep.mubr.bf16.mxu0 0
        %501 = vmatmul.mubr.bf16.gmra.mrb[0].mxu0 %v390
        %v502 = vpop.f32.mrb[0].mxu0
        %v503 = vadd.f32 %v354, %v502
        %v504 = vpop.f32.mrb[0].mxu0
        %v505 = vpop.f32.mrb[0].mxu0
        %v506 = vadd.f32 %v354, %v505
        %v507 = vpop.f32.mrb[0].mxu0
        %508 = vmatprep.mubr.bf16.mxu0 0
        %509 = vmatmul.mubr.bf16.gmra.mrb[0].mxu0 %v391
        %v510 = vpop.f32.mrb[0].mxu0
        %v511 = vadd.f32 %v354, %v510
        %v512 = vpop.f32.mrb[0].mxu0
        %v513 = vpop.f32.mrb[0].mxu0
        %v514 = vadd.f32 %v354, %v513
        %v515 = vpop.f32.mrb[0].mxu0
        %516 = vmatprep.mubr.bf16.mxu0 0
        %517 = vmatmul.mubr.bf16.gmra.mrb[0].mxu0 %v392
        %v518 = vpop.f32.mrb[0].mxu0
        %v519 = vadd.f32 %v354, %v518
        %v520 = vpop.f32.mrb[0].mxu0
        %v521 = vpop.f32.mrb[0].mxu0
        %v522 = vadd.f32 %v354, %v521
        %v523 = vpop.f32.mrb[0].mxu0
        %524 = vmatprep.mubr.bf16.mxu0 0
        %525 = vmatmul.mubr.bf16.gmra.mrb[0].mxu0 %v393
        %v526 = vpop.f32.mrb[0].mxu0
        %v527 = vadd.f32 %v354, %v526
        %v528 = vpop.f32.mrb[0].mxu0
        %v529 = vpop.f32.mrb[0].mxu0
        %v530 = vadd.f32 %v354, %v529
        %v531 = vpop.f32.mrb[0].mxu0
        %532 = vmatprep.mubr.bf16.mxu0 0
        %533 = vmatmul.mubr.bf16.gmra.mrb[0].mxu0 %v394
        %v534 = vpop.f32.mrb[0].mxu0
        %v535 = vadd.f32 %v354, %v534
        %v536 = vpop.f32.mrb[0].mxu0
        %v537 = vpop.f32.mrb[0].mxu0
        %v538 = vadd.f32 %v354, %v537
        %v539 = vpop.f32.mrb[0].mxu0
        %540 = vmatprep.mubr.bf16.mxu0 0
        %541 = vmatmul.mubr.bf16.gmra.mrb[0].mxu0 %v395
        %v542 = vpop.f32.mrb[0].mxu0
        %v543 = vadd.f32 %v354, %v542
        %v544 = vpop.f32.mrb[0].mxu0
        %v545 = vpop.f32.mrb[0].mxu0
        %v546 = vadd.f32 %v354, %v545
        %v547 = vpop.f32.mrb[0].mxu0
        %548 = vdwg.mxu0
        %v549 = vpack.c.bf16 %v490, %v487
        %v550 = vpack.c.bf16 %v498, %v495
        %v551 = vpack.c.bf16 %v506, %v503
        %v552 = vpack.c.bf16 %v514, %v511
        %v553 = vpack.c.bf16 %v522, %v519
        %v554 = vpack.c.bf16 %v530, %v527
        %v555 = vpack.c.bf16 %v538, %v535
        %v556 = vpack.c.bf16 %v546, %v543
        %v557 = vld [vmem:[#allocation4] sm:$0xf]
        %v558 = vld [vmem:[#allocation4 + $0x4] sm:$0xf]
        %v559 = vld [vmem:[#allocation4 + $0x8] sm:$0xf]
        %v560 = vld [vmem:[#allocation4 + $0xc] sm:$0xf]
        %v561 = vld [vmem:[#allocation4 + $0x10] sm:$0xf]
        %v562 = vld [vmem:[#allocation4 + $0x14] sm:$0xf]
        %v563 = vld [vmem:[#allocation4 + $0x18] sm:$0xf]
        %v564 = vld [vmem:[#allocation4 + $0x1c] sm:$0xf]
        %v565 = vld [vmem:[#allocation4 + $0x20] sm:$0xf]
        %v566 = vld [vmem:[#allocation4 + $0x24] sm:$0xf]
        %v567 = vld [vmem:[#allocation4 + $0x28] sm:$0xf]
        %v568 = vld [vmem:[#allocation4 + $0x2c] sm:$0xf]
        %v569 = vld [vmem:[#allocation4 + $0x30] sm:$0xf]
        %v570 = vld [vmem:[#allocation4 + $0x34] sm:$0xf]
        %v571 = vld [vmem:[#allocation4 + $0x38] sm:$0xf]
        %v572 = vld [vmem:[#allocation4 + $0x3c] sm:$0xf]
        %v573 = vld [vmem:[%s4] sm:$0x1]
        %v575 = vlaneseq
        %v576 = vshrl.u32 %v575, 7
        %v577 = vsub.s32 0, %v576
        %v578 = vrot.slane %v573, %v577
        %v596 = vunpack.c.l.b16 %v557
        %v597 = vunpack.c.l.b16 %v558
        %v598 = vunpack.c.l.b16 %v559
        %v599 = vunpack.c.l.b16 %v560
        %v600 = vunpack.c.l.b16 %v561
        %v601 = vunpack.c.l.b16 %v562
        %v602 = vunpack.c.l.b16 %v563
        %v603 = vunpack.c.l.b16 %v564
        %v604 = vunpack.c.l.b16 %v565
        %v605 = vunpack.c.l.b16 %v566
        %v606 = vunpack.c.l.b16 %v567
        %v607 = vunpack.c.l.b16 %v568
        %v608 = vunpack.c.l.b16 %v569
        %v609 = vunpack.c.l.b16 %v570
        %v610 = vunpack.c.l.b16 %v571
        %v611 = vunpack.c.l.b16 %v572
        %v612 = vpack.c.b16 %v597, %v596
        %v613 = vpack.c.b16 %v599, %v598
        %v614 = vpack.c.b16 %v601, %v600
        %v615 = vpack.c.b16 %v603, %v602
        %v616 = vpack.c.b16 %v605, %v604
        %v617 = vpack.c.b16 %v607, %v606
        %v618 = vpack.c.b16 %v609, %v608
        %v619 = vpack.c.b16 %v611, %v610
        %628 = vmatprep.subr.bf16.mxu0 0
        %629 = vmatpush1.bf16.msra.mxu0 %v612
        %630 = vmatprep.subr.bf16.mxu0 0
        %631 = vmatpush1.bf16.msra.mxu0 %v613
        %632 = vmatprep.subr.bf16.mxu0 0
        %633 = vmatpush1.bf16.msra.mxu0 %v614
        %634 = vmatprep.subr.bf16.mxu0 0
        %635 = vmatpush1.bf16.msra.mxu0 %v615
        %636 = vmatprep.subr.bf16.mxu0 0
        %637 = vmatpush1.bf16.msra.mxu0 %v616
        %638 = vmatprep.subr.bf16.mxu0 0
        %639 = vmatpush1.bf16.msra.mxu0 %v617
        %640 = vmatprep.subr.bf16.mxu0 0
        %641 = vmatpush1.bf16.msra.mxu0 %v618
        %642 = vmatprep.subr.bf16.mxu0 0
        %643 = vmatpush1.bf16.msra.mxu0 %v619
        %644 = vmatprep.subr.bf16.mxu0 0
        %645 = vmatpush1.bf16.msra.mxu0 0
        %646 = vmatprep.subr.bf16.mxu0 0
        %647 = vmatpush1.bf16.msra.mxu0 0
        %648 = vmatprep.subr.bf16.mxu0 0
        %649 = vmatpush1.bf16.msra.mxu0 0
        %650 = vmatprep.subr.bf16.mxu0 0
        %651 = vmatpush1.bf16.msra.mxu0 0
        %652 = vmatprep.subr.bf16.mxu0 0
        %653 = vmatpush1.bf16.msra.mxu0 0
        %654 = vmatprep.subr.bf16.mxu0 0
        %655 = vmatpush1.bf16.msra.mxu0 0
        %656 = vmatprep.subr.bf16.mxu0 0
        %657 = vmatpush1.bf16.msra.mxu0 0
        %658 = vmatprep.subr.bf16.mxu0 0
        %659 = vmatpush1.bf16.msra.mxu0 0
        %660 = vmatprep.mubr.bf16.mxu0 0
        %661 = vmatmul.mubr.bf16.gmra.mrb[0].mxu0 %v549
        %v662 = vpop.f32.mrb[0].mxu0
        %v663 = vadd.f32 %v578, %v662
        %v664 = vpop.f32.mrb[0].mxu0
        %v665 = vpop.f32.mrb[0].mxu0
        %v666 = vadd.f32 %v578, %v665
        %v667 = vpop.f32.mrb[0].mxu0
        %668 = vmatprep.mubr.bf16.mxu0 0
        %669 = vmatmul.mubr.bf16.gmra.mrb[0].mxu0 %v550
        %v670 = vpop.f32.mrb[0].mxu0
        %v671 = vadd.f32 %v578, %v670
        %v672 = vpop.f32.mrb[0].mxu0
        %v673 = vpop.f32.mrb[0].mxu0
        %v674 = vadd.f32 %v578, %v673
        %v675 = vpop.f32.mrb[0].mxu0
        %676 = vmatprep.mubr.bf16.mxu0 0
        %677 = vmatmul.mubr.bf16.gmra.mrb[0].mxu0 %v551
        %v678 = vpop.f32.mrb[0].mxu0
        %v679 = vadd.f32 %v578, %v678
        %v680 = vpop.f32.mrb[0].mxu0
        %v681 = vpop.f32.mrb[0].mxu0
        %v682 = vadd.f32 %v578, %v681
        %v683 = vpop.f32.mrb[0].mxu0
        %684 = vmatprep.mubr.bf16.mxu0 0
        %685 = vmatmul.mubr.bf16.gmra.mrb[0].mxu0 %v552
        %v686 = vpop.f32.mrb[0].mxu0
        %v687 = vadd.f32 %v578, %v686
        %v688 = vpop.f32.mrb[0].mxu0
        %v689 = vpop.f32.mrb[0].mxu0
        %v690 = vadd.f32 %v578, %v689
        %v691 = vpop.f32.mrb[0].mxu0
        %692 = vmatprep.mubr.bf16.mxu0 0
        %693 = vmatmul.mubr.bf16.gmra.mrb[0].mxu0 %v553
        %v694 = vpop.f32.mrb[0].mxu0
        %v695 = vadd.f32 %v578, %v694
        %v696 = vpop.f32.mrb[0].mxu0
        %v697 = vpop.f32.mrb[0].mxu0
        %v698 = vadd.f32 %v578, %v697
        %v699 = vpop.f32.mrb[0].mxu0
        %700 = vmatprep.mubr.bf16.mxu0 0
        %701 = vmatmul.mubr.bf16.gmra.mrb[0].mxu0 %v554
        %v702 = vpop.f32.mrb[0].mxu0
        %v703 = vadd.f32 %v578, %v702
        %v704 = vpop.f32.mrb[0].mxu0
        %v705 = vpop.f32.mrb[0].mxu0
        %v706 = vadd.f32 %v578, %v705
        %v707 = vpop.f32.mrb[0].mxu0
        %708 = vmatprep.mubr.bf16.mxu0 0
        %709 = vmatmul.mubr.bf16.gmra.mrb[0].mxu0 %v555
        %v710 = vpop.f32.mrb[0].mxu0
        %v711 = vadd.f32 %v578, %v710
        %v712 = vpop.f32.mrb[0].mxu0
        %v713 = vpop.f32.mrb[0].mxu0
        %v714 = vadd.f32 %v578, %v713
        %v715 = vpop.f32.mrb[0].mxu0
        %716 = vmatprep.mubr.bf16.mxu0 0
        %717 = vmatmul.mubr.bf16.gmra.mrb[0].mxu0 %v556
        %v718 = vpop.f32.mrb[0].mxu0
        %v719 = vadd.f32 %v578, %v718
        %v720 = vpop.f32.mrb[0].mxu0
        %v721 = vpop.f32.mrb[0].mxu0
        %v722 = vadd.f32 %v578, %v721
        %v723 = vpop.f32.mrb[0].mxu0
        %724 = vdwg.mxu0
        %v725 = vmax.f32 %v663, 0.0
        %v726 = vmax.f32 %v666, 0.0
        %v727 = vmax.f32 %v671, 0.0
        %v728 = vmax.f32 %v674, 0.0
        %v729 = vmax.f32 %v679, 0.0
        %v730 = vmax.f32 %v682, 0.0
        %v731 = vmax.f32 %v687, 0.0
        %v732 = vmax.f32 %v690, 0.0
        %v733 = vmax.f32 %v695, 0.0
        %v734 = vmax.f32 %v698, 0.0
        %v735 = vmax.f32 %v703, 0.0
        %v736 = vmax.f32 %v706, 0.0
        %v737 = vmax.f32 %v711, 0.0
        %v738 = vmax.f32 %v714, 0.0
        %v739 = vmax.f32 %v719, 0.0
        %v740 = vmax.f32 %v722, 0.0
        %v741 = vpack.c.bf16 %v726, %v725
        %v742 = vpack.c.bf16 %v728, %v727
        %v743 = vpack.c.bf16 %v730, %v729
        %v744 = vpack.c.bf16 %v732, %v731
        %v745 = vpack.c.bf16 %v734, %v733
        %v746 = vpack.c.bf16 %v736, %v735
        %v747 = vpack.c.bf16 %v738, %v737
        %v748 = vpack.c.bf16 %v740, %v739
        %s749 = scalar_lea.vmem [#allocation4], 64
        %v750 = vld [vmem:[%s749] sm:$0xf]
        %v751 = vld [vmem:[%s749 + $0x4] sm:$0xf]
        %v752 = vld [vmem:[%s749 + $0x8] sm:$0xf]
        %v753 = vld [vmem:[%s749 + $0xc] sm:$0xf]
        %v754 = vld [vmem:[%s749 + $0x10] sm:$0xf]
        %v755 = vld [vmem:[%s749 + $0x14] sm:$0xf]
        %v756 = vld [vmem:[%s749 + $0x18] sm:$0xf]
        %v757 = vld [vmem:[%s749 + $0x1c] sm:$0xf]
        %v758 = vld [vmem:[%s749 + $0x20] sm:$0xf]
        %v759 = vld [vmem:[%s749 + $0x24] sm:$0xf]
        %v760 = vld [vmem:[%s749 + $0x28] sm:$0xf]
        %v761 = vld [vmem:[%s749 + $0x2c] sm:$0xf]
        %v762 = vld [vmem:[%s749 + $0x30] sm:$0xf]
        %v763 = vld [vmem:[%s749 + $0x34] sm:$0xf]
        %v764 = vld [vmem:[%s749 + $0x38] sm:$0xf]
        %v765 = vld [vmem:[%s749 + $0x3c] sm:$0xf]
        %s766 = scalar_lea.vmem %s4, 1
        %v767 = vld [vmem:[%s766] sm:$0x1]
        %v769 = vlaneseq
        %v770 = vshrl.u32 %v769, 7
        %v771 = vsub.s32 0, %v770
        %v772 = vrot.slane %v767, %v771
        %v790 = vunpack.c.l.b16 %v750
        %v791 = vunpack.c.l.b16 %v751
        %v792 = vunpack.c.l.b16 %v752
        %v793 = vunpack.c.l.b16 %v753
        %v794 = vunpack.c.l.b16 %v754
        %v795 = vunpack.c.l.b16 %v755
        %v796 = vunpack.c.l.b16 %v756
        %v797 = vunpack.c.l.b16 %v757
        %v798 = vunpack.c.l.b16 %v758
        %v799 = vunpack.c.l.b16 %v759
        %v800 = vunpack.c.l.b16 %v760
        %v801 = vunpack.c.l.b16 %v761
        %v802 = vunpack.c.l.b16 %v762
        %v803 = vunpack.c.l.b16 %v763
        %v804 = vunpack.c.l.b16 %v764
        %v805 = vunpack.c.l.b16 %v765
        %v806 = vpack.c.b16 %v791, %v790
        %v807 = vpack.c.b16 %v793, %v792
        %v808 = vpack.c.b16 %v795, %v794
        %v809 = vpack.c.b16 %v797, %v796
        %v810 = vpack.c.b16 %v799, %v798
        %v811 = vpack.c.b16 %v801, %v800
        %v812 = vpack.c.b16 %v803, %v802
        %v813 = vpack.c.b16 %v805, %v804
        %822 = vmatprep.subr.bf16.mxu0 0
        %823 = vmatpush1.bf16.msra.mxu0 %v806
        %824 = vmatprep.subr.bf16.mxu0 0
        %825 = vmatpush1.bf16.msra.mxu0 %v807
        %826 = vmatprep.subr.bf16.mxu0 0
        %827 = vmatpush1.bf16.msra.mxu0 %v808
        %828 = vmatprep.subr.bf16.mxu0 0
        %829 = vmatpush1.bf16.msra.mxu0 %v809
        %830 = vmatprep.subr.bf16.mxu0 0
        %831 = vmatpush1.bf16.msra.mxu0 %v810
        %832 = vmatprep.subr.bf16.mxu0 0
        %833 = vmatpush1.bf16.msra.mxu0 %v811
        %834 = vmatprep.subr.bf16.mxu0 0
        %835 = vmatpush1.bf16.msra.mxu0 %v812
        %836 = vmatprep.subr.bf16.mxu0 0
        %837 = vmatpush1.bf16.msra.mxu0 %v813
        %838 = vmatprep.subr.bf16.mxu0 0
        %839 = vmatpush1.bf16.msra.mxu0 0
        %840 = vmatprep.subr.bf16.mxu0 0
        %841 = vmatpush1.bf16.msra.mxu0 0
        %842 = vmatprep.subr.bf16.mxu0 0
        %843 = vmatpush1.bf16.msra.mxu0 0
        %844 = vmatprep.subr.bf16.mxu0 0
        %845 = vmatpush1.bf16.msra.mxu0 0
        %846 = vmatprep.subr.bf16.mxu0 0
        %847 = vmatpush1.bf16.msra.mxu0 0
        %848 = vmatprep.subr.bf16.mxu0 0
        %849 = vmatpush1.bf16.msra.mxu0 0
        %850 = vmatprep.subr.bf16.mxu0 0
        %851 = vmatpush1.bf16.msra.mxu0 0
        %852 = vmatprep.subr.bf16.mxu0 0
        %853 = vmatpush1.bf16.msra.mxu0 0
        %854 = vmatprep.mubr.bf16.mxu0 0
        %855 = vmatmul.mubr.bf16.gmra.mrb[0].mxu0 %v741
        %v856 = vpop.f32.mrb[0].mxu0
        %v857 = vadd.f32 %v772, %v856
        %v858 = vpop.f32.mrb[0].mxu0
        %v859 = vpop.f32.mrb[0].mxu0
        %v860 = vadd.f32 %v772, %v859
        %v861 = vpop.f32.mrb[0].mxu0
        %862 = vmatprep.mubr.bf16.mxu0 0
        %863 = vmatmul.mubr.bf16.gmra.mrb[0].mxu0 %v742
        %v864 = vpop.f32.mrb[0].mxu0
        %v865 = vadd.f32 %v772, %v864
        %v866 = vpop.f32.mrb[0].mxu0
        %v867 = vpop.f32.mrb[0].mxu0
        %v868 = vadd.f32 %v772, %v867
        %v869 = vpop.f32.mrb[0].mxu0
        %870 = vmatprep.mubr.bf16.mxu0 0
        %871 = vmatmul.mubr.bf16.gmra.mrb[0].mxu0 %v743
        %v872 = vpop.f32.mrb[0].mxu0
        %v873 = vadd.f32 %v772, %v872
        %v874 = vpop.f32.mrb[0].mxu0
        %v875 = vpop.f32.mrb[0].mxu0
        %v876 = vadd.f32 %v772, %v875
        %v877 = vpop.f32.mrb[0].mxu0
        %878 = vmatprep.mubr.bf16.mxu0 0
        %879 = vmatmul.mubr.bf16.gmra.mrb[0].mxu0 %v744
        %v880 = vpop.f32.mrb[0].mxu0
        %v881 = vadd.f32 %v772, %v880
        %v882 = vpop.f32.mrb[0].mxu0
        %v883 = vpop.f32.mrb[0].mxu0
        %v884 = vadd.f32 %v772, %v883
        %v885 = vpop.f32.mrb[0].mxu0
        %886 = vmatprep.mubr.bf16.mxu0 0
        %887 = vmatmul.mubr.bf16.gmra.mrb[0].mxu0 %v745
        %v888 = vpop.f32.mrb[0].mxu0
        %v889 = vadd.f32 %v772, %v888
        %v890 = vpop.f32.mrb[0].mxu0
        %v891 = vpop.f32.mrb[0].mxu0
        %v892 = vadd.f32 %v772, %v891
        %v893 = vpop.f32.mrb[0].mxu0
        %894 = vmatprep.mubr.bf16.mxu0 0
        %895 = vmatmul.mubr.bf16.gmra.mrb[0].mxu0 %v746
        %v896 = vpop.f32.mrb[0].mxu0
        %v897 = vadd.f32 %v772, %v896
        %v898 = vpop.f32.mrb[0].mxu0
        %v899 = vpop.f32.mrb[0].mxu0
        %v900 = vadd.f32 %v772, %v899
        %v901 = vpop.f32.mrb[0].mxu0
        %902 = vmatprep.mubr.bf16.mxu0 0
        %903 = vmatmul.mubr.bf16.gmra.mrb[0].mxu0 %v747
        %v904 = vpop.f32.mrb[0].mxu0
        %v905 = vadd.f32 %v772, %v904
        %v906 = vpop.f32.mrb[0].mxu0
        %v907 = vpop.f32.mrb[0].mxu0
        %v908 = vadd.f32 %v772, %v907
        %v909 = vpop.f32.mrb[0].mxu0
        %910 = vmatprep.mubr.bf16.mxu0 0
        %911 = vmatmul.mubr.bf16.gmra.mrb[0].mxu0 %v748
        %v912 = vpop.f32.mrb[0].mxu0
        %v913 = vadd.f32 %v772, %v912
        %v914 = vpop.f32.mrb[0].mxu0
        %v915 = vpop.f32.mrb[0].mxu0
        %v916 = vadd.f32 %v772, %v915
        %v917 = vpop.f32.mrb[0].mxu0
        %918 = vdwg.mxu0
        %v919 = vmax.f32 %v857, 0.0
        %v920 = vmax.f32 %v860, 0.0
        %v921 = vmax.f32 %v865, 0.0
        %v922 = vmax.f32 %v868, 0.0
        %v923 = vmax.f32 %v873, 0.0
        %v924 = vmax.f32 %v876, 0.0
        %v925 = vmax.f32 %v881, 0.0
        %v926 = vmax.f32 %v884, 0.0
        %v927 = vmax.f32 %v889, 0.0
        %v928 = vmax.f32 %v892, 0.0
        %v929 = vmax.f32 %v897, 0.0
        %v930 = vmax.f32 %v900, 0.0
        %v931 = vmax.f32 %v905, 0.0
        %v932 = vmax.f32 %v908, 0.0
        %v933 = vmax.f32 %v913, 0.0
        %v934 = vmax.f32 %v916, 0.0
        %v935 = vpack.c.bf16 %v920, %v919
        %v936 = vpack.c.bf16 %v922, %v921
        %v937 = vpack.c.bf16 %v924, %v923
        %v938 = vpack.c.bf16 %v926, %v925
        %v939 = vpack.c.bf16 %v928, %v927
        %v940 = vpack.c.bf16 %v930, %v929
        %v941 = vpack.c.bf16 %v932, %v931
        %v942 = vpack.c.bf16 %v934, %v933
        %v943 = vld [vmem:[%s5] sm:$0xf]
        %v944 = vld [vmem:[%s5 + $0x4] sm:$0xf]
        %v945 = vld [vmem:[%s5 + $0x8] sm:$0xf]
        %v946 = vld [vmem:[%s5 + $0xc] sm:$0xf]
        %v947 = vld [vmem:[%s5 + $0x10] sm:$0xf]
        %v948 = vld [vmem:[%s5 + $0x14] sm:$0xf]
        %v949 = vld [vmem:[%s5 + $0x18] sm:$0xf]
        %v950 = vld [vmem:[%s5 + $0x1c] sm:$0xf]
        %v951 = vld [vmem:[%s5 + $0x20] sm:$0xf]
        %v952 = vld [vmem:[%s5 + $0x24] sm:$0xf]
        %v953 = vld [vmem:[%s5 + $0x28] sm:$0xf]
        %v954 = vld [vmem:[%s5 + $0x2c] sm:$0xf]
        %v955 = vld [vmem:[%s5 + $0x30] sm:$0xf]
        %v956 = vld [vmem:[%s5 + $0x34] sm:$0xf]
        %v957 = vld [vmem:[%s5 + $0x38] sm:$0xf]
        %v958 = vld [vmem:[%s5 + $0x3c] sm:$0xf]
        %v959 = vld [vmem:[%s6] sm:$0x1]
        %v961 = vlaneseq
        %v962 = vshrl.u32 %v961, 7
        %v963 = vsub.s32 0, %v962
        %v964 = vrot.slane %v959, %v963
        %v982 = vunpack.c.l.b16 %v943
        %v983 = vunpack.c.l.b16 %v944
        %v984 = vunpack.c.l.b16 %v945
        %v985 = vunpack.c.l.b16 %v946
        %v986 = vunpack.c.l.b16 %v947
        %v987 = vunpack.c.l.b16 %v948
        %v988 = vunpack.c.l.b16 %v949
        %v989 = vunpack.c.l.b16 %v950
        %v990 = vunpack.c.l.b16 %v951
        %v991 = vunpack.c.l.b16 %v952
        %v992 = vunpack.c.l.b16 %v953
        %v993 = vunpack.c.l.b16 %v954
        %v994 = vunpack.c.l.b16 %v955
        %v995 = vunpack.c.l.b16 %v956
        %v996 = vunpack.c.l.b16 %v957
        %v997 = vunpack.c.l.b16 %v958
        %v998 = vpack.c.b16 %v983, %v982
        %v999 = vpack.c.b16 %v985, %v984
        %v1000 = vpack.c.b16 %v987, %v986
        %v1001 = vpack.c.b16 %v989, %v988
        %v1002 = vpack.c.b16 %v991, %v990
        %v1003 = vpack.c.b16 %v993, %v992
        %v1004 = vpack.c.b16 %v995, %v994
        %v1005 = vpack.c.b16 %v997, %v996
        %1014 = vmatprep.subr.bf16.mxu0 0
        %1015 = vmatpush1.bf16.msra.mxu0 %v998
        %1016 = vmatprep.subr.bf16.mxu0 0
        %1017 = vmatpush1.bf16.msra.mxu0 %v999
        %1018 = vmatprep.subr.bf16.mxu0 0
        %1019 = vmatpush1.bf16.msra.mxu0 %v1000
        %1020 = vmatprep.subr.bf16.mxu0 0
        %1021 = vmatpush1.bf16.msra.mxu0 %v1001
        %1022 = vmatprep.subr.bf16.mxu0 0
        %1023 = vmatpush1.bf16.msra.mxu0 %v1002
        %1024 = vmatprep.subr.bf16.mxu0 0
        %1025 = vmatpush1.bf16.msra.mxu0 %v1003
        %1026 = vmatprep.subr.bf16.mxu0 0
        %1027 = vmatpush1.bf16.msra.mxu0 %v1004
        %1028 = vmatprep.subr.bf16.mxu0 0
        %1029 = vmatpush1.bf16.msra.mxu0 %v1005
        %1030 = vmatprep.subr.bf16.mxu0 0
        %1031 = vmatpush1.bf16.msra.mxu0 0
        %1032 = vmatprep.subr.bf16.mxu0 0
        %1033 = vmatpush1.bf16.msra.mxu0 0
        %1034 = vmatprep.subr.bf16.mxu0 0
        %1035 = vmatpush1.bf16.msra.mxu0 0
        %1036 = vmatprep.subr.bf16.mxu0 0
        %1037 = vmatpush1.bf16.msra.mxu0 0
        %1038 = vmatprep.subr.bf16.mxu0 0
        %1039 = vmatpush1.bf16.msra.mxu0 0
        %1040 = vmatprep.subr.bf16.mxu0 0
        %1041 = vmatpush1.bf16.msra.mxu0 0
        %1042 = vmatprep.subr.bf16.mxu0 0
        %1043 = vmatpush1.bf16.msra.mxu0 0
        %1044 = vmatprep.subr.bf16.mxu0 0
        %1045 = vmatpush1.bf16.msra.mxu0 0
        %1046 = vmatprep.mubr.bf16.mxu0 0
        %1047 = vmatmul.mubr.bf16.gmra.mrb[0].mxu0 %v935
        %v1048 = vpop.f32.mrb[0].mxu0
        %v1049 = vadd.f32 %v964, %v1048
        %v1050 = vpop.f32.mrb[0].mxu0
        %v1051 = vpop.f32.mrb[0].mxu0
        %v1052 = vadd.f32 %v964, %v1051
        %v1053 = vpop.f32.mrb[0].mxu0
        %1054 = vmatprep.mubr.bf16.mxu0 0
        %1055 = vmatmul.mubr.bf16.gmra.mrb[0].mxu0 %v936
        %v1056 = vpop.f32.mrb[0].mxu0
        %v1057 = vadd.f32 %v964, %v1056
        %v1058 = vpop.f32.mrb[0].mxu0
        %v1059 = vpop.f32.mrb[0].mxu0
        %v1060 = vadd.f32 %v964, %v1059
        %v1061 = vpop.f32.mrb[0].mxu0
        %1062 = vmatprep.mubr.bf16.mxu0 0
        %1063 = vmatmul.mubr.bf16.gmra.mrb[0].mxu0 %v937
        %v1064 = vpop.f32.mrb[0].mxu0
        %v1065 = vadd.f32 %v964, %v1064
        %v1066 = vpop.f32.mrb[0].mxu0
        %v1067 = vpop.f32.mrb[0].mxu0
        %v1068 = vadd.f32 %v964, %v1067
        %v1069 = vpop.f32.mrb[0].mxu0
        %1070 = vmatprep.mubr.bf16.mxu0 0
        %1071 = vmatmul.mubr.bf16.gmra.mrb[0].mxu0 %v938
        %v1072 = vpop.f32.mrb[0].mxu0
        %v1073 = vadd.f32 %v964, %v1072
        %v1074 = vpop.f32.mrb[0].mxu0
        %v1075 = vpop.f32.mrb[0].mxu0
        %v1076 = vadd.f32 %v964, %v1075
        %v1077 = vpop.f32.mrb[0].mxu0
        %1078 = vmatprep.mubr.bf16.mxu0 0
        %1079 = vmatmul.mubr.bf16.gmra.mrb[0].mxu0 %v939
        %v1080 = vpop.f32.mrb[0].mxu0
        %v1081 = vadd.f32 %v964, %v1080
        %v1082 = vpop.f32.mrb[0].mxu0
        %v1083 = vpop.f32.mrb[0].mxu0
        %v1084 = vadd.f32 %v964, %v1083
        %v1085 = vpop.f32.mrb[0].mxu0
        %1086 = vmatprep.mubr.bf16.mxu0 0
        %1087 = vmatmul.mubr.bf16.gmra.mrb[0].mxu0 %v940
        %v1088 = vpop.f32.mrb[0].mxu0
        %v1089 = vadd.f32 %v964, %v1088
        %v1090 = vpop.f32.mrb[0].mxu0
        %v1091 = vpop.f32.mrb[0].mxu0
        %v1092 = vadd.f32 %v964, %v1091
        %v1093 = vpop.f32.mrb[0].mxu0
        %1094 = vmatprep.mubr.bf16.mxu0 0
        %1095 = vmatmul.mubr.bf16.gmra.mrb[0].mxu0 %v941
        %v1096 = vpop.f32.mrb[0].mxu0
        %v1097 = vadd.f32 %v964, %v1096
        %v1098 = vpop.f32.mrb[0].mxu0
        %v1099 = vpop.f32.mrb[0].mxu0
        %v1100 = vadd.f32 %v964, %v1099
        %v1101 = vpop.f32.mrb[0].mxu0
        %1102 = vmatprep.mubr.bf16.mxu0 0
        %1103 = vmatmul.mubr.bf16.gmra.mrb[0].mxu0 %v942
        %v1104 = vpop.f32.mrb[0].mxu0
        %v1105 = vadd.f32 %v964, %v1104
        %v1106 = vpop.f32.mrb[0].mxu0
        %v1107 = vpop.f32.mrb[0].mxu0
        %v1108 = vadd.f32 %v964, %v1107
        %v1109 = vpop.f32.mrb[0].mxu0
        %1110 = vdwg.mxu0
        %v1111 = vmax.f32 %v1049, 0.0
        %v1112 = vmax.f32 %v1052, 0.0
        %v1113 = vmax.f32 %v1057, 0.0
        %v1114 = vmax.f32 %v1060, 0.0
        %v1115 = vmax.f32 %v1065, 0.0
        %v1116 = vmax.f32 %v1068, 0.0
        %v1117 = vmax.f32 %v1073, 0.0
        %v1118 = vmax.f32 %v1076, 0.0
        %v1119 = vmax.f32 %v1081, 0.0
        %v1120 = vmax.f32 %v1084, 0.0
        %v1121 = vmax.f32 %v1089, 0.0
        %v1122 = vmax.f32 %v1092, 0.0
        %v1123 = vmax.f32 %v1097, 0.0
        %v1124 = vmax.f32 %v1100, 0.0
        %v1125 = vmax.f32 %v1105, 0.0
        %v1126 = vmax.f32 %v1108, 0.0
        %v1127 = vand.u32 2147483647, %v1049
        %v1128 = vand.u32 2147483647, %v1052
        %v1129 = vand.u32 2147483647, %v1057
        %v1130 = vand.u32 2147483647, %v1060
        %v1131 = vand.u32 2147483647, %v1065
        %v1132 = vand.u32 2147483647, %v1068
        %v1133 = vand.u32 2147483647, %v1073
        %v1134 = vand.u32 2147483647, %v1076
        %v1135 = vand.u32 2147483647, %v1081
        %v1136 = vand.u32 2147483647, %v1084
        %v1137 = vand.u32 2147483647, %v1089
        %v1138 = vand.u32 2147483647, %v1092
        %v1139 = vand.u32 2147483647, %v1097
        %v1140 = vand.u32 2147483647, %v1100
        %v1141 = vand.u32 2147483647, %v1105
        %v1142 = vand.u32 2147483647, %v1108
        %v1143 = vsub.f32 0.0, %v1127
        %v1144 = vsub.f32 0.0, %v1128
        %v1145 = vsub.f32 0.0, %v1129
        %v1146 = vsub.f32 0.0, %v1130
        %v1147 = vsub.f32 0.0, %v1131
        %v1148 = vsub.f32 0.0, %v1132
        %v1149 = vsub.f32 0.0, %v1133
        %v1150 = vsub.f32 0.0, %v1134
        %v1151 = vsub.f32 0.0, %v1135
        %v1152 = vsub.f32 0.0, %v1136
        %v1153 = vsub.f32 0.0, %v1137
        %v1154 = vsub.f32 0.0, %v1138
        %v1155 = vsub.f32 0.0, %v1139
        %v1156 = vsub.f32 0.0, %v1140
        %v1157 = vsub.f32 0.0, %v1141
        %v1158 = vsub.f32 0.0, %v1142
        %v1159 = vmul.f32 %v1143, 1.442695
        %v1160 = vpow.pop %v1159
        %v1161 = vmul.f32 %v1144, 1.442695
        %v1162 = vpow.pop %v1161
        %v1163 = vmul.f32 %v1145, 1.442695
        %v1164 = vpow.pop %v1163
        %v1165 = vmul.f32 %v1146, 1.442695
        %v1166 = vpow.pop %v1165
        %v1167 = vmul.f32 %v1147, 1.442695
        %v1168 = vpow.pop %v1167
        %v1169 = vmul.f32 %v1148, 1.442695
        %v1170 = vpow.pop %v1169
        %v1171 = vmul.f32 %v1149, 1.442695
        %v1172 = vpow.pop %v1171
        %v1173 = vmul.f32 %v1150, 1.442695
        %v1174 = vpow.pop %v1173
        %v1175 = vmul.f32 %v1151, 1.442695
        %v1176 = vpow.pop %v1175
        %v1177 = vmul.f32 %v1152, 1.442695
        %v1178 = vpow.pop %v1177
        %v1179 = vmul.f32 %v1153, 1.442695
        %v1180 = vpow.pop %v1179
        %v1181 = vmul.f32 %v1154, 1.442695
        %v1182 = vpow.pop %v1181
        %v1183 = vmul.f32 %v1155, 1.442695
        %v1184 = vpow.pop %v1183
        %v1185 = vmul.f32 %v1156, 1.442695
        %v1186 = vpow.pop %v1185
        %v1187 = vmul.f32 %v1157, 1.442695
        %v1188 = vpow.pop %v1187
        %v1189 = vmul.f32 %v1158, 1.442695
        %v1190 = vpow.pop %v1189
        %v1191 = vadd.f32 %v1160, 1.0
        %v1192 = vlog2.pop %v1191
        %v1193 = vmul.f32 %v1192, 0.6931472
        %v1194 = vmul.f32 -0.5, %v1160
        %v1195 = vadd.f32 %v1194, 1.0
        %v1196 = vmul.f32 %v1195, %v1160
        %v1197 = vand.u32 2147483647, %v1160
        %vm1198 = vcmp.lt.f32.partialorder %v1197, 0.0004427343
        %v1199 = vsel %vm1198, %v1196, %v1193
        %v1200 = vadd.f32 %v1162, 1.0
        %v1201 = vlog2.pop %v1200
        %v1202 = vmul.f32 %v1201, 0.6931472
        %v1203 = vmul.f32 -0.5, %v1162
        %v1204 = vadd.f32 %v1203, 1.0
        %v1205 = vmul.f32 %v1204, %v1162
        %v1206 = vand.u32 2147483647, %v1162
        %vm1207 = vcmp.lt.f32.partialorder %v1206, 0.0004427343
        %v1208 = vsel %vm1207, %v1205, %v1202
        %v1209 = vadd.f32 %v1164, 1.0
        %v1210 = vlog2.pop %v1209
        %v1211 = vmul.f32 %v1210, 0.6931472
        %v1212 = vmul.f32 -0.5, %v1164
        %v1213 = vadd.f32 %v1212, 1.0
        %v1214 = vmul.f32 %v1213, %v1164
        %v1215 = vand.u32 2147483647, %v1164
        %vm1216 = vcmp.lt.f32.partialorder %v1215, 0.0004427343
        %v1217 = vsel %vm1216, %v1214, %v1211
        %v1218 = vadd.f32 %v1166, 1.0
        %v1219 = vlog2.pop %v1218
        %v1220 = vmul.f32 %v1219, 0.6931472
        %v1221 = vmul.f32 -0.5, %v1166
        %v1222 = vadd.f32 %v1221, 1.0
        %v1223 = vmul.f32 %v1222, %v1166
        %v1224 = vand.u32 2147483647, %v1166
        %vm1225 = vcmp.lt.f32.partialorder %v1224, 0.0004427343
        %v1226 = vsel %vm1225, %v1223, %v1220
        %v1227 = vadd.f32 %v1168, 1.0
        %v1228 = vlog2.pop %v1227
        %v1229 = vmul.f32 %v1228, 0.6931472
        %v1230 = vmul.f32 -0.5, %v1168
        %v1231 = vadd.f32 %v1230, 1.0
        %v1232 = vmul.f32 %v1231, %v1168
        %v1233 = vand.u32 2147483647, %v1168
        %vm1234 = vcmp.lt.f32.partialorder %v1233, 0.0004427343
        %v1235 = vsel %vm1234, %v1232, %v1229
        %v1236 = vadd.f32 %v1170, 1.0
        %v1237 = vlog2.pop %v1236
        %v1238 = vmul.f32 %v1237, 0.6931472
        %v1239 = vmul.f32 -0.5, %v1170
        %v1240 = vadd.f32 %v1239, 1.0
        %v1241 = vmul.f32 %v1240, %v1170
        %v1242 = vand.u32 2147483647, %v1170
        %vm1243 = vcmp.lt.f32.partialorder %v1242, 0.0004427343
        %v1244 = vsel %vm1243, %v1241, %v1238
        %v1245 = vadd.f32 %v1172, 1.0
        %v1246 = vlog2.pop %v1245
        %v1247 = vmul.f32 %v1246, 0.6931472
        %v1248 = vmul.f32 -0.5, %v1172
        %v1249 = vadd.f32 %v1248, 1.0
        %v1250 = vmul.f32 %v1249, %v1172
        %v1251 = vand.u32 2147483647, %v1172
        %vm1252 = vcmp.lt.f32.partialorder %v1251, 0.0004427343
        %v1253 = vsel %vm1252, %v1250, %v1247
        %v1254 = vadd.f32 %v1174, 1.0
        %v1255 = vlog2.pop %v1254
        %v1256 = vmul.f32 %v1255, 0.6931472
        %v1257 = vmul.f32 -0.5, %v1174
        %v1258 = vadd.f32 %v1257, 1.0
        %v1259 = vmul.f32 %v1258, %v1174
        %v1260 = vand.u32 2147483647, %v1174
        %vm1261 = vcmp.lt.f32.partialorder %v1260, 0.0004427343
        %v1262 = vsel %vm1261, %v1259, %v1256
        %v1263 = vadd.f32 %v1176, 1.0
        %v1264 = vlog2.pop %v1263
        %v1265 = vmul.f32 %v1264, 0.6931472
        %v1266 = vmul.f32 -0.5, %v1176
        %v1267 = vadd.f32 %v1266, 1.0
        %v1268 = vmul.f32 %v1267, %v1176
        %v1269 = vand.u32 2147483647, %v1176
        %vm1270 = vcmp.lt.f32.partialorder %v1269, 0.0004427343
        %v1271 = vsel %vm1270, %v1268, %v1265
        %v1272 = vadd.f32 %v1178, 1.0
        %v1273 = vlog2.pop %v1272
        %v1274 = vmul.f32 %v1273, 0.6931472
        %v1275 = vmul.f32 -0.5, %v1178
        %v1276 = vadd.f32 %v1275, 1.0
        %v1277 = vmul.f32 %v1276, %v1178
        %v1278 = vand.u32 2147483647, %v1178
        %vm1279 = vcmp.lt.f32.partialorder %v1278, 0.0004427343
        %v1280 = vsel %vm1279, %v1277, %v1274
        %v1281 = vadd.f32 %v1180, 1.0
        %v1282 = vlog2.pop %v1281
        %v1283 = vmul.f32 %v1282, 0.6931472
        %v1284 = vmul.f32 -0.5, %v1180
        %v1285 = vadd.f32 %v1284, 1.0
        %v1286 = vmul.f32 %v1285, %v1180
        %v1287 = vand.u32 2147483647, %v1180
        %vm1288 = vcmp.lt.f32.partialorder %v1287, 0.0004427343
        %v1289 = vsel %vm1288, %v1286, %v1283
        %v1290 = vadd.f32 %v1182, 1.0
        %v1291 = vlog2.pop %v1290
        %v1292 = vmul.f32 %v1291, 0.6931472
        %v1293 = vmul.f32 -0.5, %v1182
        %v1294 = vadd.f32 %v1293, 1.0
        %v1295 = vmul.f32 %v1294, %v1182
        %v1296 = vand.u32 2147483647, %v1182
        %vm1297 = vcmp.lt.f32.partialorder %v1296, 0.0004427343
        %v1298 = vsel %vm1297, %v1295, %v1292
        %v1299 = vadd.f32 %v1184, 1.0
        %v1300 = vlog2.pop %v1299
        %v1301 = vmul.f32 %v1300, 0.6931472
        %v1302 = vmul.f32 -0.5, %v1184
        %v1303 = vadd.f32 %v1302, 1.0
        %v1304 = vmul.f32 %v1303, %v1184
        %v1305 = vand.u32 2147483647, %v1184
        %vm1306 = vcmp.lt.f32.partialorder %v1305, 0.0004427343
        %v1307 = vsel %vm1306, %v1304, %v1301
        %v1308 = vadd.f32 %v1186, 1.0
        %v1309 = vlog2.pop %v1308
        %v1310 = vmul.f32 %v1309, 0.6931472
        %v1311 = vmul.f32 -0.5, %v1186
        %v1312 = vadd.f32 %v1311, 1.0
        %v1313 = vmul.f32 %v1312, %v1186
        %v1314 = vand.u32 2147483647, %v1186
        %vm1315 = vcmp.lt.f32.partialorder %v1314, 0.0004427343
        %v1316 = vsel %vm1315, %v1313, %v1310
        %v1317 = vadd.f32 %v1188, 1.0
        %v1318 = vlog2.pop %v1317
        %v1319 = vmul.f32 %v1318, 0.6931472
        %v1320 = vmul.f32 -0.5, %v1188
        %v1321 = vadd.f32 %v1320, 1.0
        %v1322 = vmul.f32 %v1321, %v1188
        %v1323 = vand.u32 2147483647, %v1188
        %vm1324 = vcmp.lt.f32.partialorder %v1323, 0.0004427343
        %v1325 = vsel %vm1324, %v1322, %v1319
        %v1326 = vadd.f32 %v1190, 1.0
        %v1327 = vlog2.pop %v1326
        %v1328 = vmul.f32 %v1327, 0.6931472
        %v1329 = vmul.f32 -0.5, %v1190
        %v1330 = vadd.f32 %v1329, 1.0
        %v1331 = vmul.f32 %v1330, %v1190
        %v1332 = vand.u32 2147483647, %v1190
        %vm1333 = vcmp.lt.f32.partialorder %v1332, 0.0004427343
        %v1334 = vsel %vm1333, %v1331, %v1328
        %v1335 = vadd.f32 %v1111, %v1199
        %v1336 = vadd.f32 %v1112, %v1208
        %v1337 = vadd.f32 %v1113, %v1217
        %v1338 = vadd.f32 %v1114, %v1226
        %v1339 = vadd.f32 %v1115, %v1235
        %v1340 = vadd.f32 %v1116, %v1244
        %v1341 = vadd.f32 %v1117, %v1253
        %v1342 = vadd.f32 %v1118, %v1262
        %v1343 = vadd.f32 %v1119, %v1271
        %v1344 = vadd.f32 %v1120, %v1280
        %v1345 = vadd.f32 %v1121, %v1289
        %v1346 = vadd.f32 %v1122, %v1298
        %v1347 = vadd.f32 %v1123, %v1307
        %v1348 = vadd.f32 %v1124, %v1316
        %v1349 = vadd.f32 %v1125, %v1325
        %v1350 = vadd.f32 %v1126, %v1334
        %v1351 = vlaneseq
        %v1352 = vand.u32 %v1351, 127
        %vm1353 = vcmp.eq.s32.totalorder %v1352, 0
        %v1354 = vadd.f32 %v1335, 1e-06
        %v1355 = vadd.f32 %v1336, 1e-06
        %v1356 = vadd.f32 %v1337, 1e-06
        %v1357 = vadd.f32 %v1338, 1e-06
        %v1358 = vadd.f32 %v1339, 1e-06
        %v1359 = vadd.f32 %v1340, 1e-06
        %v1360 = vadd.f32 %v1341, 1e-06
        %v1361 = vadd.f32 %v1342, 1e-06
        %v1362 = vadd.f32 %v1343, 1e-06
        %v1363 = vadd.f32 %v1344, 1e-06
        %v1364 = vadd.f32 %v1345, 1e-06
        %v1365 = vadd.f32 %v1346, 1e-06
        %v1366 = vadd.f32 %v1347, 1e-06
        %v1367 = vadd.f32 %v1348, 1e-06
        %v1368 = vadd.f32 %v1349, 1e-06
        %v1369 = vadd.f32 %v1350, 1e-06
        %v1370 = vsel %vm1353, %v1049, %v1354
        %v1371 = vsel %vm1353, %v1052, %v1355
        %v1372 = vsel %vm1353, %v1057, %v1356
        %v1373 = vsel %vm1353, %v1060, %v1357
        %v1374 = vsel %vm1353, %v1065, %v1358
        %v1375 = vsel %vm1353, %v1068, %v1359
        %v1376 = vsel %vm1353, %v1073, %v1360
        %v1377 = vsel %vm1353, %v1076, %v1361
        %v1378 = vsel %vm1353, %v1081, %v1362
        %v1379 = vsel %vm1353, %v1084, %v1363
        %v1380 = vsel %vm1353, %v1089, %v1364
        %v1381 = vsel %vm1353, %v1092, %v1365
        %v1382 = vsel %vm1353, %v1097, %v1366
        %v1383 = vsel %vm1353, %v1100, %v1367
        %v1384 = vsel %vm1353, %v1105, %v1368
        %v1385 = vsel %vm1353, %v1108, %v1369
        %vm1386 = vcmask 15360
        %1387 = vst.msk [vmem:[%s314] sm:$0xff] %vm1386, %v1370
        %1388 = vst.msk [vmem:[%s314 + $0x8] sm:$0xff] %vm1386, %v1371
        %1389 = vst.msk [vmem:[%s314 + $0x10] sm:$0xff] %vm1386, %v1372
        %1390 = vst.msk [vmem:[%s314 + $0x18] sm:$0xff] %vm1386, %v1373
        %1391 = vst.msk [vmem:[%s314 + $0x20] sm:$0xff] %vm1386, %v1374
        %1392 = vst.msk [vmem:[%s314 + $0x28] sm:$0xff] %vm1386, %v1375
        %1393 = vst.msk [vmem:[%s314 + $0x30] sm:$0xff] %vm1386, %v1376
        %1394 = vst.msk [vmem:[%s314 + $0x38] sm:$0xff] %vm1386, %v1377
        %1395 = vst.msk [vmem:[%s314 + $0x40] sm:$0xff] %vm1386, %v1378
        %1396 = vst.msk [vmem:[%s314 + $0x48] sm:$0xff] %vm1386, %v1379
        %1397 = vst.msk [vmem:[%s314 + $0x50] sm:$0xff] %vm1386, %v1380
        %1398 = vst.msk [vmem:[%s314 + $0x58] sm:$0xff] %vm1386, %v1381
        %1399 = vst.msk [vmem:[%s314 + $0x60] sm:$0xff] %vm1386, %v1382
        %1400 = vst.msk [vmem:[%s314 + $0x68] sm:$0xff] %vm1386, %v1383
        %1401 = vst.msk [vmem:[%s314 + $0x70] sm:$0xff] %vm1386, %v1384
        %1402 = vst.msk [vmem:[%s314 + $0x78] sm:$0xff] %vm1386, %v1385
        %s1403 = smul.u32 16, %s22
        %p1404 = scmp.lt.s32.totalorder %s1403, 63
        %s1405 = scalar_select %p1404, %s1403, 63
        %s1406 = smul.addr %s1405, 8
        %s1407 = scalar_lea.vmem %s7, %s1406
        // Predicated region
        $region57: #{tpu_custom_call.1} parent=47 // pred_check
          %p1408 = pneg %p192
        $region58: #{tpu_custom_call.1} parent=47 // pred_check_branch
          %1410 = sbr.rel (%p1408) target = $region60
        $region59: #{tpu_custom_call.1} parent=47 // pred_region
          %s1411 = smul.u32 16, %s22
        $region60: #{tpu_custom_call.1} parent=47 // pred_fallthru
          _
      $region48: #{tpu_custom_call.1} parent=5 // pred_fallthru
        _
      %p1412 = scmp.le.s32.totalorder 2, %s17
      // Predicated region
      $region61: #{tpu_custom_call.1} parent=5 // pred_check
        %p1413 = pneg %p1412
      $region62: #{tpu_custom_call.1} parent=5 // pred_check_branch
        %1415 = sbr.rel (%p1413) target = $region64
      $region63: #{tpu_custom_call.1} parent=5 // pred_region
        %s1416 = ssub.s32 %s17, 2
        // Predicated region
        $region65: #{tpu_custom_call.1} parent=63 // pred_check
          %p1417 = pneg %p198
        $region66: #{tpu_custom_call.1} parent=63 // pred_check_branch
          %1419 = sbr.rel (%p1417) target = $region68
        $region67: #{tpu_custom_call.1} parent=63 // pred_region
          %s1420 = smul.u32 16, %s23
          %p1421 = scmp.lt.s32.totalorder %s1420, 63
          %s1422 = scalar_select %p1421, %s1420, 63
          %s1423 = smul.addr %s1422, 8
          %s1424 = scalar_lea.vmem %s7, %s1423
        $region68: #{tpu_custom_call.1} parent=63 // pred_fallthru
          _
      $region64: #{tpu_custom_call.1} parent=5 // pred_fallthru
        _
    $region6: #{tpu_custom_call.1} parent=1 // loop_footer
      %s21 = sadd.s32 1, %s17
    $region7: #{tpu_custom_call.1} parent=1 // loop_footer_branch
      %16 = sbr.rel target = $region3
    $region8: #{tpu_custom_call.1} parent=1 // loop_exit
      _
    %1425 = vsyncpa [#allocation3], 1
    %s1426 = scalar_lea.sflag [#allocation3], 1
    %1427 = vsyncpa %s1426, 1
    %1428 = vsyncpa [#allocation5], 1

</llo_original>
